<compile_context>
chip_gen: v5e
topology: v5e:2x2
jax: 0.10.0
libtpu: 0.0.40
codegen_flags: <defaults>
</compile_context>

<pallas_src>
import functools

import jax
import jax.numpy as jnp
from jax.experimental import pallas as pl


# --------------------------------------------------------------------------
# Fused kernel: argmax on logits, pairwise IoU(annot, anchors) + argmax,
# MXU one-hot gather of the selected anchors/reg params, decode, thresholded
# diagonal IoU (Acc / MaxPos), and the img_size rescale + y1x1y2x2 swap.
# --------------------------------------------------------------------------
def _evaluator_kernel(annot_ref, imsz_ref, att_ref, reg_ref, anch_ref, out_ref,
                      *, acc_iou_threshold):
    B, A = att_ref.shape
    f32 = jnp.float32

    # ---- constant anchors: (4, A) slab, rows = x1, y1, x2, y2 ----
    anch = anch_ref[...]
    ax1, ay1, ax2, ay2 = anch[0:1], anch[1:2], anch[2:3], anch[3:4]   # (1, A)

    # ---- ground truth ----
    annot = annot_ref[...]                                  # (B, 4)
    tx1, ty1 = annot[:, 0:1], annot[:, 1:2]
    tx2, ty2 = annot[:, 2:3], annot[:, 3:4]
    area_t = (tx2 - tx1) * (ty2 - ty1)                      # (B, 1)

    # ---- pairwise IoU(annot, anchors): (B, A), exact division ----
    iw = jnp.maximum(jnp.minimum(tx2, ax2) - jnp.maximum(tx1, ax1), 0.0)
    ih = jnp.maximum(jnp.minimum(ty2, ay2) - jnp.maximum(ty1, ay1), 0.0)
    inter = iw * ih
    area_a = (ax2 - ax1) * (ay2 - ay1)                      # (1, A)
    iou = inter / (area_t + area_a - inter + 1e-8)          # (B, A)

    # ---- fused max / first-occurrence argmax over anchors for [logits ; iou] ----
    # sigmoid is strictly monotonic, so the argmax of the raw logits equals the
    # argmax of sigmoid(logits); sigmoid is applied only to the selected max.
    both = jnp.concatenate([att_ref[...], iou], axis=0)     # (2B, A)
    lane = jax.lax.broadcasted_iota(jnp.int32, both.shape, 1)
    bmax = jnp.max(both, axis=-1, keepdims=True)            # (2B, 1)
    # NOTE: an all-NaN row would make ids == A and the gather return zeros;
    # inputs are assumed finite (same behavior as before).
    ids_all = jnp.min(jnp.where(both == bmax, lane, A),
                      axis=-1, keepdims=True)               # (2B, 1) int32
    att_score = jax.nn.sigmoid(bmax[0:B])                   # (B, 1)

    # ---- MXU-routed gather of the selected anchors / reg params ----
    onehot = (lane == ids_all).astype(f32)                  # (2B, A)
    nt = (((1,), (1,)), ((), ()))                           # contract lane dims
    anch_sel = jax.lax.dot_general(onehot, anch, nt,
                                   preferred_element_type=f32)        # (2B, 4)
    reg_sel8 = jax.lax.dot_general(onehot, reg_ref[...], nt,
                                   preferred_element_type=f32)        # (2B, 4B)

    # pick the matching-batch column out of each plane group of reg_sel8
    rows = jax.lax.broadcasted_iota(jnp.int32, (2 * B, B), 0)
    cols = jax.lax.broadcasted_iota(jnp.int32, (2 * B, B), 1)
    bmask = ((rows == cols) | (rows == cols + B)).astype(f32)         # (2B, B)

    def pick_plane(p):
        return jnp.sum(reg_sel8[:, p * B:(p + 1) * B] * bmask,
                       axis=1, keepdims=True)               # (2B, 1)

    dcx, dcy = pick_plane(0), pick_plane(1)
    dw, dh = pick_plane(2), pick_plane(3)
    sx1, sy1 = anch_sel[:, 0:1], anch_sel[:, 1:2]
    sx2, sy2 = anch_sel[:, 2:3], anch_sel[:, 3:4]

    # ---- decode (reg_params_to_bbox at the selected anchors only) ----
    aw, ah = sx2 - sx1, sy2 - sy1
    pcx = dcx * aw + (sx1 + sx2) * 0.5
    pcy = dcy * ah + (sy1 + sy2) * 0.5
    pw, ph = jnp.exp(dw) * aw, jnp.exp(dh) * ah
    bx1, by1 = pcx - 0.5 * pw, pcy - 0.5 * ph
    bx2, by2 = pcx + 0.5 * pw, pcy + 0.5 * ph               # (2B, 1)

    # ---- diagonal IoU(best_box, annot) -> threshold -> batch mean ----
    annot2 = jnp.concatenate([annot, annot], axis=0)        # (2B, 4)
    qx1, qy1 = annot2[:, 0:1], annot2[:, 1:2]
    qx2, qy2 = annot2[:, 2:3], annot2[:, 3:4]
    area_q = jnp.concatenate([area_t, area_t], axis=0)      # (2B, 1)
    diw = jnp.maximum(jnp.minimum(bx2, qx2) - jnp.maximum(bx1, qx1), 0.0)
    dih = jnp.maximum(jnp.minimum(by2, qy2) - jnp.maximum(by1, qy1), 0.0)
    dinter = diw * dih
    diou = dinter / (pw * ph + area_q - dinter + 1e-8)      # exact division
    ok = (diou >= acc_iou_threshold).astype(f32)            # (2B, 1)
    acc_att = jnp.sum(ok[0:B], axis=0, keepdims=True) * (1.0 / B)       # Acc
    acc_exp = jnp.sum(ok[B:2 * B], axis=0, keepdims=True) * (1.0 / B)   # MaxPos

    # ---- fold the post-kernel tail: ((box+1)/2)*img_size, x1y1x2y2->y1x1y2x2 ----
    isz = imsz_ref[...]                                     # (B, 2)
    s0, s1 = isz[:, 0:1], isz[:, 1:2]
    top_y1 = (by1[0:B] + 1.0) * 0.5 * s1
    top_x1 = (bx1[0:B] + 1.0) * 0.5 * s0
    top_y2 = (by2[0:B] + 1.0) * 0.5 * s1
    top_x2 = (bx2[0:B] + 1.0) * 0.5 * s0

    # ---- single coalesced (8, 128) output ----
    payload = jnp.concatenate(
        [top_y1, top_x1, top_y2, top_x2, att_score,
         jnp.broadcast_to(acc_att, (B, 1)),
         jnp.broadcast_to(acc_exp, (B, 1))], axis=1)        # (B, 7)
    out_ref[...] = jnp.zeros_like(out_ref)
    out_ref[0:B, 0:7] = payload


def _full_spec(shape):
    return pl.BlockSpec(shape, lambda: (0,) * len(shape))


# --------------------------------------------------------------------------
# Plain-JAX glue (anchor setup once, jitted wrapper, output unpacking).
# --------------------------------------------------------------------------
def create_anchors(feat_sizes, ratios, scales):
    """Deterministic anchors (A, 4) in x1y1x2y2, normalized to [-1, 1]."""
    all_anchors = []
    for (h, w) in feat_sizes:
        cy = (jnp.arange(h, dtype=jnp.float32) + 0.5) / h * 2.0 - 1.0
        cx = (jnp.arange(w, dtype=jnp.float32) + 0.5) / w * 2.0 - 1.0
        cyg, cxg = jnp.meshgrid(cy, cx, indexing="ij")
        base_h, base_w = 2.0 / h, 2.0 / w
        for r in ratios:
            for s in scales:
                ah = base_h * s * (r ** 0.5)
                aw = base_w * s / (r ** 0.5)
                all_anchors.append(jnp.stack(
                    [cxg.ravel() - aw / 2, cyg.ravel() - ah / 2,
                     cxg.ravel() + aw / 2, cyg.ravel() + ah / 2], axis=1))
    return jnp.concatenate(all_anchors, axis=0)


def make_anchor_slab(anchors):
    """Constant (4, A) anchor slab (rows x1,y1,x2,y2). Built once, outside jit."""
    return jnp.asarray(anchors.T, dtype=jnp.float32)


@functools.partial(jax.jit, static_argnames=("acc_iou_threshold",))
def evaluator_forward(att_box, reg_box, annot, img_size, idxs, anch_slab,
                      acc_iou_threshold=0.5):
    B, A, _ = att_box.shape
    att = att_box.reshape(B, A)                       # free reshape (squeeze)
    # Plane-major reg slab (4B, A): row = plane*B + batch.  One small (~40 KB)
    # relayout; the anchor half of the old per-call slab is gone entirely.
    reg_slab = jnp.transpose(reg_box, (2, 0, 1)).reshape(4 * B, A)

    kernel = functools.partial(_evaluator_kernel,
                               acc_iou_threshold=float(acc_iou_threshold))
    out = pl.pallas_call(
        kernel,
        out_shape=jax.ShapeDtypeStruct((8, 128), jnp.float32),
        in_specs=[_full_spec((B, 4)),        # annot
                  _full_spec((B, 2)),        # img_size
                  _full_spec((B, A)),        # att logits
                  _full_spec((4 * B, A)),    # reg plane slab
                  _full_spec((4, A))],       # constant anchor slab
        out_specs=_full_spec((8, 128)),
    )(annot, img_size, att, reg_slab, anch_slab)

    top_boxes = out[0:B, 0:4]        # y1x1y2x2, already scaled to img_size
    score = out[0:B, 4:5]            # best sigmoid score per image, (B, 1)

    # TODO(synk): the interactive top-k(k=100) loop with data-dependent break,
    # pandas CSV read, cv2 drawing, subprocess 'display' and user input() has no
    # Pallas/JAX equivalent; only the top-1 numeric path is implemented.
    return {
        "Acc": out[0, 5],
        "MaxPos": out[0, 6],
        "idxs": idxs,
        "pred_boxes": top_boxes,
        "pred_scores": score,
        "top_scores": score[:, 0],
    }


if __name__ == "__main__":
    cfg = dict(alpha=0.25, gamma=2.0, use_focal=True, use_softmax=False,
               use_multi=False, lamb_reg=1.0, acc_iou_threshold=0.5)
    ratios = (0.5, 1.0)
    scales = (1.0, 1.26)
    feat_sizes = ((16, 16), (8, 8))
    anchors = create_anchors(feat_sizes, ratios, scales)     # (1280, 4)
    anch_slab = make_anchor_slab(anchors)                    # (4, 1280), built once
    A = anchors.shape[0]
    B = 2

    key = jax.random.PRNGKey(0)
    k1, k2, k3, k4 = jax.random.split(key, 4)
    att_box = jax.random.normal(k1, (B, A, 1), jnp.float32)          # logits
    reg_box = 0.1 * jax.random.normal(k2, (B, A, 4), jnp.float32)    # reg params
    c = jax.random.uniform(k3, (B, 2), minval=-0.5, maxval=0.5)
    wh = jax.random.uniform(k4, (B, 2), minval=0.2, maxval=0.6)
    annot = jnp.concatenate([c - wh / 2, c + wh / 2], axis=1).astype(jnp.float32)
    img_size = jnp.array([[416.0, 416.0], [320.0, 480.0]], jnp.float32)
    idxs = jnp.arange(B, dtype=jnp.int32)

    out_dict = evaluator_forward(att_box, reg_box, annot, img_size, idxs,
                                 anch_slab,
                                 acc_iou_threshold=cfg["acc_iou_threshold"])
    jax.block_until_ready(out_dict)
    print("KERNEL_OK")
</pallas_src>

<mosaic_0001>
module attributes {stable_mosaic.version = 11 : i64} {
  func.func @_evaluator_kernel(%arg0: memref<2x4xf32, #tpu.memory_space<vmem>>, %arg1: memref<2x2xf32, #tpu.memory_space<vmem>>, %arg2: memref<2x1280xf32, #tpu.memory_space<vmem>>, %arg3: memref<8x1280xf32, #tpu.memory_space<vmem>>, %arg4: memref<4x1280xf32, #tpu.memory_space<vmem>>, %arg5: memref<8x128xf32, #tpu.memory_space<vmem>>) attributes {dimension_semantics = [], scalar_prefetch = 0 : i64, scratch_operands = 0 : i64, tpu.core_type = #tpu.core_type<tc>} {
    %c0 = arith.constant 0 : index
    %c0_0 = arith.constant 0 : index
    %0 = vector.load %arg4[%c0, %c0_0] : memref<4x1280xf32, #tpu.memory_space<vmem>>, vector<4x1280xf32>
    %1 = vector.extract_strided_slice %0 {offsets = [0, 0], sizes = [1, 1280], strides = [1, 1]} : vector<4x1280xf32> to vector<1x1280xf32>
    %2 = vector.extract_strided_slice %0 {offsets = [1, 0], sizes = [1, 1280], strides = [1, 1]} : vector<4x1280xf32> to vector<1x1280xf32>
    %3 = vector.extract_strided_slice %0 {offsets = [2, 0], sizes = [1, 1280], strides = [1, 1]} : vector<4x1280xf32> to vector<1x1280xf32>
    %4 = vector.extract_strided_slice %0 {offsets = [3, 0], sizes = [1, 1280], strides = [1, 1]} : vector<4x1280xf32> to vector<1x1280xf32>
    %c0_1 = arith.constant 0 : index
    %c0_2 = arith.constant 0 : index
    %5 = vector.load %arg0[%c0_1, %c0_2] : memref<2x4xf32, #tpu.memory_space<vmem>>, vector<2x4xf32>
    %6 = vector.extract_strided_slice %5 {offsets = [0, 0], sizes = [2, 1], strides = [1, 1]} : vector<2x4xf32> to vector<2x1xf32>
    %7 = vector.extract_strided_slice %5 {offsets = [0, 1], sizes = [2, 1], strides = [1, 1]} : vector<2x4xf32> to vector<2x1xf32>
    %8 = vector.extract_strided_slice %5 {offsets = [0, 2], sizes = [2, 1], strides = [1, 1]} : vector<2x4xf32> to vector<2x1xf32>
    %9 = vector.extract_strided_slice %5 {offsets = [0, 3], sizes = [2, 1], strides = [1, 1]} : vector<2x4xf32> to vector<2x1xf32>
    %10 = arith.subf %8, %6 : vector<2x1xf32>
    %11 = arith.subf %9, %7 : vector<2x1xf32>
    %12 = arith.mulf %10, %11 : vector<2x1xf32>
    %13 = vector.broadcast %8 : vector<2x1xf32> to vector<2x1280xf32>
    %14 = vector.broadcast %3 : vector<1x1280xf32> to vector<2x1280xf32>
    %15 = arith.minimumf %13, %14 : vector<2x1280xf32>
    %16 = vector.broadcast %6 : vector<2x1xf32> to vector<2x1280xf32>
    %17 = vector.broadcast %1 : vector<1x1280xf32> to vector<2x1280xf32>
    %18 = arith.maximumf %16, %17 : vector<2x1280xf32>
    %19 = arith.subf %15, %18 : vector<2x1280xf32>
    %cst = arith.constant 0.000000e+00 : f32
    %20 = vector.broadcast %cst : f32 to vector<2x1280xf32>
    %21 = arith.maximumf %19, %20 : vector<2x1280xf32>
    %22 = vector.broadcast %9 : vector<2x1xf32> to vector<2x1280xf32>
    %23 = vector.broadcast %4 : vector<1x1280xf32> to vector<2x1280xf32>
    %24 = arith.minimumf %22, %23 : vector<2x1280xf32>
    %25 = vector.broadcast %7 : vector<2x1xf32> to vector<2x1280xf32>
    %26 = vector.broadcast %2 : vector<1x1280xf32> to vector<2x1280xf32>
    %27 = arith.maximumf %25, %26 : vector<2x1280xf32>
    %28 = arith.subf %24, %27 : vector<2x1280xf32>
    %cst_3 = arith.constant 0.000000e+00 : f32
    %29 = vector.broadcast %cst_3 : f32 to vector<2x1280xf32>
    %30 = arith.maximumf %28, %29 : vector<2x1280xf32>
    %31 = arith.mulf %21, %30 : vector<2x1280xf32>
    %32 = arith.subf %3, %1 : vector<1x1280xf32>
    %33 = arith.subf %4, %2 : vector<1x1280xf32>
    %34 = arith.mulf %32, %33 : vector<1x1280xf32>
    %35 = vector.broadcast %12 : vector<2x1xf32> to vector<2x1280xf32>
    %36 = vector.broadcast %34 : vector<1x1280xf32> to vector<2x1280xf32>
    %37 = arith.addf %35, %36 : vector<2x1280xf32>
    %38 = arith.subf %37, %31 : vector<2x1280xf32>
    %cst_4 = arith.constant 9.99999993E-9 : f32
    %39 = vector.broadcast %cst_4 : f32 to vector<2x1280xf32>
    %40 = arith.addf %38, %39 : vector<2x1280xf32>
    %41 = arith.divf %31, %40 : vector<2x1280xf32>
    %c0_5 = arith.constant 0 : index
    %c0_6 = arith.constant 0 : index
    %42 = vector.load %arg2[%c0_5, %c0_6] : memref<2x1280xf32, #tpu.memory_space<vmem>>, vector<2x1280xf32>
    %43 = tpu.concatenate %42, %41 in 0 : vector<2x1280xf32>, vector<2x1280xf32> -> vector<4x1280xf32>
    %44 = tpu.iota {dimensions = array<i32: 1>} : vector<4x1280xi32>
    %cst_7 = arith.constant dense<0xFF800000> : vector<4xf32>
    %45 = vector.multi_reduction <maximumf>, %43, %cst_7 [1] : vector<4x1280xf32> to vector<4xf32>
    %46 = vector.shape_cast %45 : vector<4xf32> to vector<4x1xf32>
    %47 = vector.broadcast %46 : vector<4x1xf32> to vector<4x1280xf32>
    %48 = arith.cmpf oeq, %43, %47 : vector<4x1280xf32>
    %c1280_i32 = arith.constant 1280 : i32
    %49 = vector.broadcast %c1280_i32 : i32 to vector<4x1280xi32>
    %50 = arith.select %48, %44, %49 : vector<4x1280xi1>, vector<4x1280xi32>
    %cst_8 = arith.constant dense<2147483647> : vector<4xi32>
    %51 = vector.multi_reduction <minsi>, %50, %cst_8 [1] : vector<4x1280xi32> to vector<4xi32>
    %52 = vector.shape_cast %51 : vector<4xi32> to vector<4x1xi32>
    %53 = vector.extract_strided_slice %46 {offsets = [0, 0], sizes = [2, 1], strides = [1, 1]} : vector<4x1xf32> to vector<2x1xf32>
    %54 = arith.negf %53 : vector<2x1xf32>
    %55 = math.exp %54 : vector<2x1xf32>
    %cst_9 = arith.constant 1.000000e+00 : f32
    %56 = vector.broadcast %cst_9 : f32 to vector<2x1xf32>
    %57 = arith.addf %56, %55 : vector<2x1xf32>
    %58 = arith.divf %56, %57 : vector<2x1xf32>
    %59 = vector.broadcast %52 : vector<4x1xi32> to vector<4x1280xi32>
    %60 = arith.cmpi eq, %44, %59 : vector<4x1280xi32>
    %61 = arith.extui %60 : vector<4x1280xi1> to vector<4x1280xi32>
    %62 = arith.sitofp %61 : vector<4x1280xi32> to vector<4x1280xf32>
    %cst_10 = arith.constant dense<0.000000e+00> : vector<4x4xf32>
    %63 = tpu.matmul %62, %0, %cst_10 {dimension_numbers = #tpu.dot_dimension_numbers<[1], [1], [0], [0], [0, 0, 1, 0], [], []>} : vector<4x1280xf32>, vector<4x1280xf32>, vector<4x4xf32> -> vector<4x4xf32>
    %c0_11 = arith.constant 0 : index
    %c0_12 = arith.constant 0 : index
    %64 = vector.load %arg3[%c0_11, %c0_12] : memref<8x1280xf32, #tpu.memory_space<vmem>>, vector<8x1280xf32>
    %cst_13 = arith.constant dense<0.000000e+00> : vector<4x8xf32>
    %65 = tpu.matmul %62, %64, %cst_13 {dimension_numbers = #tpu.dot_dimension_numbers<[1], [1], [0], [0], [0, 0, 1, 0], [], []>} : vector<4x1280xf32>, vector<8x1280xf32>, vector<4x8xf32> -> vector<4x8xf32>
    %66 = tpu.iota {dimensions = array<i32: 0>} : vector<4x2xi32>
    %67 = tpu.iota {dimensions = array<i32: 1>} : vector<4x2xi32>
    %68 = arith.cmpi eq, %66, %67 : vector<4x2xi32>
    %c2_i32 = arith.constant 2 : i32
    %69 = vector.broadcast %c2_i32 : i32 to vector<4x2xi32>
    %70 = arith.addi %67, %69 : vector<4x2xi32>
    %71 = arith.cmpi eq, %66, %70 : vector<4x2xi32>
    %72 = arith.ori %68, %71 : vector<4x2xi1>
    %73 = arith.extui %72 : vector<4x2xi1> to vector<4x2xi32>
    %74 = arith.sitofp %73 : vector<4x2xi32> to vector<4x2xf32>
    %75 = vector.extract_strided_slice %65 {offsets = [0, 0], sizes = [4, 2], strides = [1, 1]} : vector<4x8xf32> to vector<4x2xf32>
    %76 = arith.mulf %75, %74 : vector<4x2xf32>
    %cst_14 = arith.constant dense<0.000000e+00> : vector<4xf32>
    %77 = vector.multi_reduction <add>, %76, %cst_14 [1] : vector<4x2xf32> to vector<4xf32>
    %78 = vector.shape_cast %77 : vector<4xf32> to vector<4x1xf32>
    %79 = vector.extract_strided_slice %65 {offsets = [0, 2], sizes = [4, 2], strides = [1, 1]} : vector<4x8xf32> to vector<4x2xf32>
    %80 = arith.mulf %79, %74 : vector<4x2xf32>
    %cst_15 = arith.constant dense<0.000000e+00> : vector<4xf32>
    %81 = vector.multi_reduction <add>, %80, %cst_15 [1] : vector<4x2xf32> to vector<4xf32>
    %82 = vector.shape_cast %81 : vector<4xf32> to vector<4x1xf32>
    %83 = vector.extract_strided_slice %65 {offsets = [0, 4], sizes = [4, 2], strides = [1, 1]} : vector<4x8xf32> to vector<4x2xf32>
    %84 = arith.mulf %83, %74 : vector<4x2xf32>
    %cst_16 = arith.constant dense<0.000000e+00> : vector<4xf32>
    %85 = vector.multi_reduction <add>, %84, %cst_16 [1] : vector<4x2xf32> to vector<4xf32>
    %86 = vector.shape_cast %85 : vector<4xf32> to vector<4x1xf32>
    %87 = vector.extract_strided_slice %65 {offsets = [0, 6], sizes = [4, 2], strides = [1, 1]} : vector<4x8xf32> to vector<4x2xf32>
    %88 = arith.mulf %87, %74 : vector<4x2xf32>
    %cst_17 = arith.constant dense<0.000000e+00> : vector<4xf32>
    %89 = vector.multi_reduction <add>, %88, %cst_17 [1] : vector<4x2xf32> to vector<4xf32>
    %90 = vector.shape_cast %89 : vector<4xf32> to vector<4x1xf32>
    %91 = vector.extract_strided_slice %63 {offsets = [0, 0], sizes = [4, 1], strides = [1, 1]} : vector<4x4xf32> to vector<4x1xf32>
    %92 = vector.extract_strided_slice %63 {offsets = [0, 1], sizes = [4, 1], strides = [1, 1]} : vector<4x4xf32> to vector<4x1xf32>
    %93 = vector.extract_strided_slice %63 {offsets = [0, 2], sizes = [4, 1], strides = [1, 1]} : vector<4x4xf32> to vector<4x1xf32>
    %94 = vector.extract_strided_slice %63 {offsets = [0, 3], sizes = [4, 1], strides = [1, 1]} : vector<4x4xf32> to vector<4x1xf32>
    %95 = arith.subf %93, %91 : vector<4x1xf32>
    %96 = arith.subf %94, %92 : vector<4x1xf32>
    %97 = arith.mulf %78, %95 : vector<4x1xf32>
    %98 = arith.addf %91, %93 : vector<4x1xf32>
    %cst_18 = arith.constant 5.000000e-01 : f32
    %99 = vector.broadcast %cst_18 : f32 to vector<4x1xf32>
    %100 = arith.mulf %98, %99 : vector<4x1xf32>
    %101 = arith.addf %97, %100 : vector<4x1xf32>
    %102 = arith.mulf %82, %96 : vector<4x1xf32>
    %103 = arith.addf %92, %94 : vector<4x1xf32>
    %cst_19 = arith.constant 5.000000e-01 : f32
    %104 = vector.broadcast %cst_19 : f32 to vector<4x1xf32>
    %105 = arith.mulf %103, %104 : vector<4x1xf32>
    %106 = arith.addf %102, %105 : vector<4x1xf32>
    %107 = math.exp %86 : vector<4x1xf32>
    %108 = arith.mulf %107, %95 : vector<4x1xf32>
    %109 = math.exp %90 : vector<4x1xf32>
    %110 = arith.mulf %109, %96 : vector<4x1xf32>
    %cst_20 = arith.constant 5.000000e-01 : f32
    %111 = vector.broadcast %cst_20 : f32 to vector<4x1xf32>
    %112 = arith.mulf %111, %108 : vector<4x1xf32>
    %113 = arith.subf %101, %112 : vector<4x1xf32>
    %cst_21 = arith.constant 5.000000e-01 : f32
    %114 = vector.broadcast %cst_21 : f32 to vector<4x1xf32>
    %115 = arith.mulf %114, %110 : vector<4x1xf32>
    %116 = arith.subf %106, %115 : vector<4x1xf32>
    %cst_22 = arith.constant 5.000000e-01 : f32
    %117 = vector.broadcast %cst_22 : f32 to vector<4x1xf32>
    %118 = arith.mulf %117, %108 : vector<4x1xf32>
    %119 = arith.addf %101, %118 : vector<4x1xf32>
    %cst_23 = arith.constant 5.000000e-01 : f32
    %120 = vector.broadcast %cst_23 : f32 to vector<4x1xf32>
    %121 = arith.mulf %120, %110 : vector<4x1xf32>
    %122 = arith.addf %106, %121 : vector<4x1xf32>
    %123 = tpu.concatenate %5, %5 in 0 : vector<2x4xf32>, vector<2x4xf32> -> vector<4x4xf32>
    %124 = vector.extract_strided_slice %123 {offsets = [0, 0], sizes = [4, 1], strides = [1, 1]} : vector<4x4xf32> to vector<4x1xf32>
    %125 = vector.extract_strided_slice %123 {offsets = [0, 1], sizes = [4, 1], strides = [1, 1]} : vector<4x4xf32> to vector<4x1xf32>
    %126 = vector.extract_strided_slice %123 {offsets = [0, 2], sizes = [4, 1], strides = [1, 1]} : vector<4x4xf32> to vector<4x1xf32>
    %127 = vector.extract_strided_slice %123 {offsets = [0, 3], sizes = [4, 1], strides = [1, 1]} : vector<4x4xf32> to vector<4x1xf32>
    %128 = tpu.concatenate %12, %12 in 0 : vector<2x1xf32>, vector<2x1xf32> -> vector<4x1xf32>
    %129 = arith.minimumf %119, %126 : vector<4x1xf32>
    %130 = arith.maximumf %113, %124 : vector<4x1xf32>
    %131 = arith.subf %129, %130 : vector<4x1xf32>
    %cst_24 = arith.constant 0.000000e+00 : f32
    %132 = vector.broadcast %cst_24 : f32 to vector<4x1xf32>
    %133 = arith.maximumf %131, %132 : vector<4x1xf32>
    %134 = arith.minimumf %122, %127 : vector<4x1xf32>
    %135 = arith.maximumf %116, %125 : vector<4x1xf32>
    %136 = arith.subf %134, %135 : vector<4x1xf32>
    %cst_25 = arith.constant 0.000000e+00 : f32
    %137 = vector.broadcast %cst_25 : f32 to vector<4x1xf32>
    %138 = arith.maximumf %136, %137 : vector<4x1xf32>
    %139 = arith.mulf %133, %138 : vector<4x1xf32>
    %140 = arith.mulf %108, %110 : vector<4x1xf32>
    %141 = arith.addf %140, %128 : vector<4x1xf32>
    %142 = arith.subf %141, %139 : vector<4x1xf32>
    %cst_26 = arith.constant 9.99999993E-9 : f32
    %143 = vector.broadcast %cst_26 : f32 to vector<4x1xf32>
    %144 = arith.addf %142, %143 : vector<4x1xf32>
    %145 = arith.divf %139, %144 : vector<4x1xf32>
    %cst_27 = arith.constant 5.000000e-01 : f32
    %146 = vector.broadcast %cst_27 : f32 to vector<4x1xf32>
    %147 = arith.cmpf oge, %145, %146 : vector<4x1xf32>
    %148 = arith.extui %147 : vector<4x1xi1> to vector<4x1xi32>
    %149 = arith.sitofp %148 : vector<4x1xi32> to vector<4x1xf32>
    %150 = vector.extract_strided_slice %149 {offsets = [0, 0], sizes = [2, 1], strides = [1, 1]} : vector<4x1xf32> to vector<2x1xf32>
    %cst_28 = arith.constant dense<0.000000e+00> : vector<1xf32>
    %151 = vector.multi_reduction <add>, %150, %cst_28 [0] : vector<2x1xf32> to vector<1xf32>
    %152 = vector.shape_cast %151 : vector<1xf32> to vector<1x1xf32>
    %cst_29 = arith.constant 5.000000e-01 : f32
    %153 = vector.broadcast %cst_29 : f32 to vector<1x1xf32>
    %154 = arith.mulf %152, %153 : vector<1x1xf32>
    %155 = vector.extract_strided_slice %149 {offsets = [2, 0], sizes = [2, 1], strides = [1, 1]} : vector<4x1xf32> to vector<2x1xf32>
    %cst_30 = arith.constant dense<0.000000e+00> : vector<1xf32>
    %156 = vector.multi_reduction <add>, %155, %cst_30 [0] : vector<2x1xf32> to vector<1xf32>
    %157 = vector.shape_cast %156 : vector<1xf32> to vector<1x1xf32>
    %cst_31 = arith.constant 5.000000e-01 : f32
    %158 = vector.broadcast %cst_31 : f32 to vector<1x1xf32>
    %159 = arith.mulf %157, %158 : vector<1x1xf32>
    %c0_32 = arith.constant 0 : index
    %c0_33 = arith.constant 0 : index
    %160 = vector.load %arg1[%c0_32, %c0_33] : memref<2x2xf32, #tpu.memory_space<vmem>>, vector<2x2xf32>
    %161 = vector.extract_strided_slice %160 {offsets = [0, 0], sizes = [2, 1], strides = [1, 1]} : vector<2x2xf32> to vector<2x1xf32>
    %162 = vector.extract_strided_slice %160 {offsets = [0, 1], sizes = [2, 1], strides = [1, 1]} : vector<2x2xf32> to vector<2x1xf32>
    %163 = vector.extract_strided_slice %116 {offsets = [0, 0], sizes = [2, 1], strides = [1, 1]} : vector<4x1xf32> to vector<2x1xf32>
    %cst_34 = arith.constant 1.000000e+00 : f32
    %164 = vector.broadcast %cst_34 : f32 to vector<2x1xf32>
    %165 = arith.addf %163, %164 : vector<2x1xf32>
    %cst_35 = arith.constant 5.000000e-01 : f32
    %166 = vector.broadcast %cst_35 : f32 to vector<2x1xf32>
    %167 = arith.mulf %165, %166 : vector<2x1xf32>
    %168 = arith.mulf %167, %162 : vector<2x1xf32>
    %169 = vector.extract_strided_slice %113 {offsets = [0, 0], sizes = [2, 1], strides = [1, 1]} : vector<4x1xf32> to vector<2x1xf32>
    %cst_36 = arith.constant 1.000000e+00 : f32
    %170 = vector.broadcast %cst_36 : f32 to vector<2x1xf32>
    %171 = arith.addf %169, %170 : vector<2x1xf32>
    %cst_37 = arith.constant 5.000000e-01 : f32
    %172 = vector.broadcast %cst_37 : f32 to vector<2x1xf32>
    %173 = arith.mulf %171, %172 : vector<2x1xf32>
    %174 = arith.mulf %173, %161 : vector<2x1xf32>
    %175 = vector.extract_strided_slice %122 {offsets = [0, 0], sizes = [2, 1], strides = [1, 1]} : vector<4x1xf32> to vector<2x1xf32>
    %cst_38 = arith.constant 1.000000e+00 : f32
    %176 = vector.broadcast %cst_38 : f32 to vector<2x1xf32>
    %177 = arith.addf %175, %176 : vector<2x1xf32>
    %cst_39 = arith.constant 5.000000e-01 : f32
    %178 = vector.broadcast %cst_39 : f32 to vector<2x1xf32>
    %179 = arith.mulf %177, %178 : vector<2x1xf32>
    %180 = arith.mulf %179, %162 : vector<2x1xf32>
    %181 = vector.extract_strided_slice %119 {offsets = [0, 0], sizes = [2, 1], strides = [1, 1]} : vector<4x1xf32> to vector<2x1xf32>
    %cst_40 = arith.constant 1.000000e+00 : f32
    %182 = vector.broadcast %cst_40 : f32 to vector<2x1xf32>
    %183 = arith.addf %181, %182 : vector<2x1xf32>
    %cst_41 = arith.constant 5.000000e-01 : f32
    %184 = vector.broadcast %cst_41 : f32 to vector<2x1xf32>
    %185 = arith.mulf %183, %184 : vector<2x1xf32>
    %186 = arith.mulf %185, %161 : vector<2x1xf32>
    %187 = vector.shape_cast %154 : vector<1x1xf32> to vector<1x1xf32>
    %188 = vector.broadcast %187 : vector<1x1xf32> to vector<2x1xf32>
    %189 = vector.shape_cast %159 : vector<1x1xf32> to vector<1x1xf32>
    %190 = vector.broadcast %189 : vector<1x1xf32> to vector<2x1xf32>
    %191 = tpu.concatenate %168, %174, %180, %186, %58, %188, %190 in 1 : vector<2x1xf32>, vector<2x1xf32>, vector<2x1xf32>, vector<2x1xf32>, vector<2x1xf32>, vector<2x1xf32>, vector<2x1xf32> -> vector<2x7xf32>
    %cst_42 = arith.constant 0.000000e+00 : f32
    %192 = vector.broadcast %cst_42 : f32 to vector<8x128xf32>
    %c0_43 = arith.constant 0 : index
    %c0_44 = arith.constant 0 : index
    %193 = vector.load %arg5[%c0_43, %c0_44] : memref<8x128xf32, #tpu.memory_space<vmem>>, vector<8x128xf32>
    tpu.vector_store %arg5[%c0_43, %c0_44], %192 {strides = array<i32>} : memref<8x128xf32, #tpu.memory_space<vmem>>, vector<8x128xf32>,
    %c0_45 = arith.constant 0 : index
    %c0_46 = arith.constant 0 : index
    %194 = vector.load %arg5[%c0_45, %c0_46] : memref<8x128xf32, #tpu.memory_space<vmem>>, vector<2x7xf32>
    tpu.vector_store %arg5[%c0_45, %c0_46], %191 {strides = array<i32>} : memref<8x128xf32, #tpu.memory_space<vmem>>, vector<2x7xf32>,
    return
  }
}

</mosaic_0001>

<llo_original>
// kernel: evaluator_forward.1
$region0: #{evaluator_forward.1}
  #allocation0 [shape = 'u32[]', space=smem, size = 0x4, offset = 0x4, fixed_abs, tag = 'smem constant byte address 0x4 - core index']
  #allocation1 [shape = 'u32[72,128]{1,0:T(1,128)}', space=vmem, size = 0x9000, scoped, tag = 'internal scratch']
  %s0 = inlined_call_operand.vmem [shape: f32[2,4], index: 0, kind: input, shape index: {}]
  %s1 = inlined_call_operand.vmem [shape: f32[2,2], index: 1, kind: input, shape index: {}]
  %s2 = inlined_call_operand.vmem [shape: f32[2,1280], index: 2, kind: input, shape index: {}]
  %s3 = inlined_call_operand.vmem [shape: f32[8,1280], index: 3, kind: input, shape index: {}]
  %s4 = inlined_call_operand.vmem [shape: f32[4,1280], index: 4, kind: input, shape index: {}]
  %s5 = inlined_call_operand.vmem [shape: f32[8,128], index: 5, kind: output, shape index: {}]
  %s6 = sld [smem:[#allocation0]]
  $region30: #{evaluator_forward.1} parent=0
    _
  %s8 = ssub.s32 1, %s6
  %s9 = scalar_select 0, %s8, %s6
  // Predicated region
  $region2: #{evaluator_forward.1} parent=0 // pred_check
    _
  $region3: #{evaluator_forward.1} parent=0 // pred_check_branch
    %11 = sbr.rel (0) target = $region5
  $region4: #{evaluator_forward.1} parent=0 // pred_region
    _
  $region5: #{evaluator_forward.1} parent=0 // pred_fallthru
    _
  // Predicated region
  $region6: #{evaluator_forward.1} parent=0 // pred_check
    _
  $region7: #{evaluator_forward.1} parent=0 // pred_check_branch
    %13 = sbr.rel (0) target = $region9
  $region8: #{evaluator_forward.1} parent=0 // pred_region
    _
  $region9: #{evaluator_forward.1} parent=0 // pred_fallthru
    _
  // Predicated region
  $region10: #{evaluator_forward.1} parent=0 // pred_check
    _
  $region11: #{evaluator_forward.1} parent=0 // pred_check_branch
    %15 = sbr.rel (0) target = $region13
  $region12: #{evaluator_forward.1} parent=0 // pred_region
    _
  $region13: #{evaluator_forward.1} parent=0 // pred_fallthru
    _
  // Predicated region
  $region14: #{evaluator_forward.1} parent=0 // pred_check
    _
  $region15: #{evaluator_forward.1} parent=0 // pred_check_branch
    %17 = sbr.rel (0) target = $region17
  $region16: #{evaluator_forward.1} parent=0 // pred_region
    _
  $region17: #{evaluator_forward.1} parent=0 // pred_fallthru
    _
  // Predicated region
  $region18: #{evaluator_forward.1} parent=0 // pred_check
    _
  $region19: #{evaluator_forward.1} parent=0 // pred_check_branch
    %19 = sbr.rel (0) target = $region21
  $region20: #{evaluator_forward.1} parent=0 // pred_region
    _
  $region21: #{evaluator_forward.1} parent=0 // pred_fallthru
    _
  %v20 = vld [vmem:[%s4] sm:$0xff]
  %v21 = vld [vmem:[%s4 + $0x8] sm:$0xff]
  %v22 = vld [vmem:[%s4 + $0x10] sm:$0xff]
  %v23 = vld [vmem:[%s4 + $0x18] sm:$0xff]
  %v24 = vld [vmem:[%s4 + $0x20] sm:$0xff]
  %v25 = vld [vmem:[%s0] sm:$0x3]
  %27 = vrot.lane.b32.xlu0 %v25, 2
  %v28 = vpop.permute.xlu0 %27
  %v30 = vsub.f32 %v25, %v28
  %32 = vrot.lane.b32.xlu0 %v30, 127
  %v33 = vpop.permute.xlu0 %32
  %v35 = vmul.f32 %v30, %v33
  %36 = vset.pattern.permute.xlu0 2
  %37 = vperm.xlu0 %36, %v25
  %v38 = vpop.permute.xlu0 %37
  %v45 = vperm.slane %v20, 2
  %v46 = vperm.slane %v20, 6
  %v47 = vperm.slane %v21, 2
  %v48 = vperm.slane %v21, 6
  %v49 = vperm.slane %v22, 2
  %v50 = vperm.slane %v22, 6
  %v51 = vperm.slane %v23, 2
  %v52 = vperm.slane %v23, 6
  %v53 = vperm.slane %v24, 2
  %v54 = vperm.slane %v24, 6
  %v65 = vperm.slane %v45, 2
  %v66 = vperm.slane %v46, 2
  %v67 = vperm.slane %v47, 2
  %v68 = vperm.slane %v48, 2
  %v69 = vperm.slane %v49, 2
  %v70 = vperm.slane %v50, 2
  %v71 = vperm.slane %v51, 2
  %v72 = vperm.slane %v52, 2
  %v73 = vperm.slane %v53, 2
  %v74 = vperm.slane %v54, 2
  %v75 = vmin.f32 %v38, %v65
  %v76 = vmin.f32 %v38, %v66
  %v77 = vmin.f32 %v38, %v67
  %v78 = vmin.f32 %v38, %v68
  %v79 = vmin.f32 %v38, %v69
  %v80 = vmin.f32 %v38, %v70
  %v81 = vmin.f32 %v38, %v71
  %v82 = vmin.f32 %v38, %v72
  %v83 = vmin.f32 %v38, %v73
  %v84 = vmin.f32 %v38, %v74
  %85 = vset.pattern.permute.xlu0 0
  %86 = vperm.xlu0 %85, %v25
  %v87 = vpop.permute.xlu0 %86
  %v89 = vperm.slane %v20, 0
  %v90 = vperm.slane %v20, 4
  %v91 = vperm.slane %v21, 0
  %v92 = vperm.slane %v21, 4
  %v93 = vperm.slane %v22, 0
  %v94 = vperm.slane %v22, 4
  %v95 = vperm.slane %v23, 0
  %v96 = vperm.slane %v23, 4
  %v97 = vperm.slane %v24, 0
  %v98 = vperm.slane %v24, 4
  %v109 = vperm.slane %v89, 0
  %v110 = vperm.slane %v90, 0
  %v111 = vperm.slane %v91, 0
  %v112 = vperm.slane %v92, 0
  %v113 = vperm.slane %v93, 0
  %v114 = vperm.slane %v94, 0
  %v115 = vperm.slane %v95, 0
  %v116 = vperm.slane %v96, 0
  %v117 = vperm.slane %v97, 0
  %v118 = vperm.slane %v98, 0
  %v119 = vmax.f32 %v87, %v109
  %v120 = vmax.f32 %v87, %v110
  %v121 = vmax.f32 %v87, %v111
  %v122 = vmax.f32 %v87, %v112
  %v123 = vmax.f32 %v87, %v113
  %v124 = vmax.f32 %v87, %v114
  %v125 = vmax.f32 %v87, %v115
  %v126 = vmax.f32 %v87, %v116
  %v127 = vmax.f32 %v87, %v117
  %v128 = vmax.f32 %v87, %v118
  %v129 = vsub.f32 %v75, %v119
  %v130 = vsub.f32 %v76, %v120
  %v131 = vsub.f32 %v77, %v121
  %v132 = vsub.f32 %v78, %v122
  %v133 = vsub.f32 %v79, %v123
  %v134 = vsub.f32 %v80, %v124
  %v135 = vsub.f32 %v81, %v125
  %v136 = vsub.f32 %v82, %v126
  %v137 = vsub.f32 %v83, %v127
  %v138 = vsub.f32 %v84, %v128
  %v139 = vmax.f32 %v129, 0.0
  %v140 = vmax.f32 %v130, 0.0
  %v141 = vmax.f32 %v131, 0.0
  %v142 = vmax.f32 %v132, 0.0
  %v143 = vmax.f32 %v133, 0.0
  %v144 = vmax.f32 %v134, 0.0
  %v145 = vmax.f32 %v135, 0.0
  %v146 = vmax.f32 %v136, 0.0
  %v147 = vmax.f32 %v137, 0.0
  %v148 = vmax.f32 %v138, 0.0
  %149 = vset.pattern.permute.xlu0 3
  %150 = vperm.xlu0 %149, %v25
  %v151 = vpop.permute.xlu0 %150
  %v153 = vperm.slane %v20, 3
  %v154 = vperm.slane %v20, 7
  %v155 = vperm.slane %v21, 3
  %v156 = vperm.slane %v21, 7
  %v157 = vperm.slane %v22, 3
  %v158 = vperm.slane %v22, 7
  %v159 = vperm.slane %v23, 3
  %v160 = vperm.slane %v23, 7
  %v161 = vperm.slane %v24, 3
  %v162 = vperm.slane %v24, 7
  %v173 = vperm.slane %v153, 3
  %v174 = vperm.slane %v154, 3
  %v175 = vperm.slane %v155, 3
  %v176 = vperm.slane %v156, 3
  %v177 = vperm.slane %v157, 3
  %v178 = vperm.slane %v158, 3
  %v179 = vperm.slane %v159, 3
  %v180 = vperm.slane %v160, 3
  %v181 = vperm.slane %v161, 3
  %v182 = vperm.slane %v162, 3
  %v183 = vmin.f32 %v151, %v173
  %v184 = vmin.f32 %v151, %v174
  %v185 = vmin.f32 %v151, %v175
  %v186 = vmin.f32 %v151, %v176
  %v187 = vmin.f32 %v151, %v177
  %v188 = vmin.f32 %v151, %v178
  %v189 = vmin.f32 %v151, %v179
  %v190 = vmin.f32 %v151, %v180
  %v191 = vmin.f32 %v151, %v181
  %v192 = vmin.f32 %v151, %v182
  %193 = vset.pattern.permute.xlu0 1
  %194 = vperm.xlu0 %193, %v25
  %v195 = vpop.permute.xlu0 %194
  %v197 = vperm.slane %v20, 1
  %v198 = vperm.slane %v20, 5
  %v199 = vperm.slane %v21, 1
  %v200 = vperm.slane %v21, 5
  %v201 = vperm.slane %v22, 1
  %v202 = vperm.slane %v22, 5
  %v203 = vperm.slane %v23, 1
  %v204 = vperm.slane %v23, 5
  %v205 = vperm.slane %v24, 1
  %v206 = vperm.slane %v24, 5
  %v217 = vperm.slane %v197, 1
  %v218 = vperm.slane %v198, 1
  %v219 = vperm.slane %v199, 1
  %v220 = vperm.slane %v200, 1
  %v221 = vperm.slane %v201, 1
  %v222 = vperm.slane %v202, 1
  %v223 = vperm.slane %v203, 1
  %v224 = vperm.slane %v204, 1
  %v225 = vperm.slane %v205, 1
  %v226 = vperm.slane %v206, 1
  %v227 = vmax.f32 %v195, %v217
  %v228 = vmax.f32 %v195, %v218
  %v229 = vmax.f32 %v195, %v219
  %v230 = vmax.f32 %v195, %v220
  %v231 = vmax.f32 %v195, %v221
  %v232 = vmax.f32 %v195, %v222
  %v233 = vmax.f32 %v195, %v223
  %v234 = vmax.f32 %v195, %v224
  %v235 = vmax.f32 %v195, %v225
  %v236 = vmax.f32 %v195, %v226
  %v237 = vsub.f32 %v183, %v227
  %v238 = vsub.f32 %v184, %v228
  %v239 = vsub.f32 %v185, %v229
  %v240 = vsub.f32 %v186, %v230
  %v241 = vsub.f32 %v187, %v231
  %v242 = vsub.f32 %v188, %v232
  %v243 = vsub.f32 %v189, %v233
  %v244 = vsub.f32 %v190, %v234
  %v245 = vsub.f32 %v191, %v235
  %v246 = vsub.f32 %v192, %v236
  %v247 = vmax.f32 %v237, 0.0
  %v248 = vmax.f32 %v238, 0.0
  %v249 = vmax.f32 %v239, 0.0
  %v250 = vmax.f32 %v240, 0.0
  %v251 = vmax.f32 %v241, 0.0
  %v252 = vmax.f32 %v242, 0.0
  %v253 = vmax.f32 %v243, 0.0
  %v254 = vmax.f32 %v244, 0.0
  %v255 = vmax.f32 %v245, 0.0
  %v256 = vmax.f32 %v246, 0.0
  %v257 = vmul.f32 %v139, %v247
  %v258 = vmul.f32 %v140, %v248
  %v259 = vmul.f32 %v141, %v249
  %v260 = vmul.f32 %v142, %v250
  %v261 = vmul.f32 %v143, %v251
  %v262 = vmul.f32 %v144, %v252
  %v263 = vmul.f32 %v145, %v253
  %v264 = vmul.f32 %v146, %v254
  %v265 = vmul.f32 %v147, %v255
  %v266 = vmul.f32 %v148, %v256
  %v267 = vrot.slane %v20, 6
  %v268 = vrot.slane %v21, 6
  %v269 = vrot.slane %v22, 6
  %v270 = vrot.slane %v23, 6
  %v271 = vrot.slane %v24, 6
  %v277 = vsub.f32 %v20, %v267
  %v278 = vsub.f32 %v21, %v268
  %v279 = vsub.f32 %v22, %v269
  %v280 = vsub.f32 %v23, %v270
  %v281 = vsub.f32 %v24, %v271
  %v287 = vrot.slane %v277, 5
  %v288 = vrot.slane %v287, 4
  %v289 = vrot.slane %v278, 5
  %v290 = vrot.slane %v289, 4
  %v291 = vrot.slane %v279, 5
  %v292 = vrot.slane %v291, 4
  %v293 = vrot.slane %v280, 5
  %v294 = vrot.slane %v293, 4
  %v295 = vrot.slane %v281, 5
  %v296 = vrot.slane %v295, 4
  %v302 = vmul.f32 %v277, %v288
  %v303 = vmul.f32 %v278, %v290
  %v304 = vmul.f32 %v279, %v292
  %v305 = vmul.f32 %v280, %v294
  %v306 = vmul.f32 %v281, %v296
  %308 = vset.pattern.permute.xlu0 2
  %309 = vperm.xlu0 %308, %v35
  %v310 = vpop.permute.xlu0 %309
  %v317 = vperm.slane %v302, 2
  %v318 = vperm.slane %v302, 6
  %v319 = vperm.slane %v303, 2
  %v320 = vperm.slane %v303, 6
  %v321 = vperm.slane %v304, 2
  %v322 = vperm.slane %v304, 6
  %v323 = vperm.slane %v305, 2
  %v324 = vperm.slane %v305, 6
  %v325 = vperm.slane %v306, 2
  %v326 = vperm.slane %v306, 6
  %v337 = vperm.slane %v317, 2
  %v338 = vperm.slane %v318, 2
  %v339 = vperm.slane %v319, 2
  %v340 = vperm.slane %v320, 2
  %v341 = vperm.slane %v321, 2
  %v342 = vperm.slane %v322, 2
  %v343 = vperm.slane %v323, 2
  %v344 = vperm.slane %v324, 2
  %v345 = vperm.slane %v325, 2
  %v346 = vperm.slane %v326, 2
  %v347 = vadd.f32 %v310, %v337
  %v348 = vadd.f32 %v310, %v338
  %v349 = vadd.f32 %v310, %v339
  %v350 = vadd.f32 %v310, %v340
  %v351 = vadd.f32 %v310, %v341
  %v352 = vadd.f32 %v310, %v342
  %v353 = vadd.f32 %v310, %v343
  %v354 = vadd.f32 %v310, %v344
  %v355 = vadd.f32 %v310, %v345
  %v356 = vadd.f32 %v310, %v346
  %v357 = vsub.f32 %v347, %v257
  %v358 = vsub.f32 %v348, %v258
  %v359 = vsub.f32 %v349, %v259
  %v360 = vsub.f32 %v350, %v260
  %v361 = vsub.f32 %v351, %v261
  %v362 = vsub.f32 %v352, %v262
  %v363 = vsub.f32 %v353, %v263
  %v364 = vsub.f32 %v354, %v264
  %v365 = vsub.f32 %v355, %v265
  %v366 = vsub.f32 %v356, %v266
  %v367 = vadd.f32 %v357, 1e-08
  %v368 = vadd.f32 %v358, 1e-08
  %v369 = vadd.f32 %v359, 1e-08
  %v370 = vadd.f32 %v360, 1e-08
  %v371 = vadd.f32 %v361, 1e-08
  %v372 = vadd.f32 %v362, 1e-08
  %v373 = vadd.f32 %v363, 1e-08
  %v374 = vadd.f32 %v364, 1e-08
  %v375 = vadd.f32 %v365, 1e-08
  %v376 = vadd.f32 %v366, 1e-08
  %v377 = vrcp.pop %v367
  %v378 = vmul.f32 %v367, %v377
  %v379 = vsub.f32 1.0, %v378
  %v380 = vmul.f32 %v377, %v379
  %v381 = vadd.f32 %v377, %v380
  %vm382 = vweird.f32 %v367
  %vm383 = vweird.f32 %v377
  %vm384 = vmor %vm382, %vm383
  %v385 = vsel %vm384, %v377, %v381
  %v386 = vand.u32 2147483647, %v367
  %vm387 = vcmp.eq.f32.partialorder %v386, 8.507059e+37
  %v388 = vand.u32 %v367, 2147483648
  %v389 = vor.u32 1.1754944e-38, %v388
  %v390 = vsel %vm387, %v389, %v385
  %v391 = vmul.f32 %v257, %v390
  %v392 = vrcp.pop %v368
  %v393 = vmul.f32 %v368, %v392
  %v394 = vsub.f32 1.0, %v393
  %v395 = vmul.f32 %v392, %v394
  %v396 = vadd.f32 %v392, %v395
  %vm397 = vweird.f32 %v368
  %vm398 = vweird.f32 %v392
  %vm399 = vmor %vm397, %vm398
  %v400 = vsel %vm399, %v392, %v396
  %v401 = vand.u32 2147483647, %v368
  %vm402 = vcmp.eq.f32.partialorder %v401, 8.507059e+37
  %v403 = vand.u32 %v368, 2147483648
  %v404 = vor.u32 1.1754944e-38, %v403
  %v405 = vsel %vm402, %v404, %v400
  %v406 = vmul.f32 %v258, %v405
  %v407 = vrcp.pop %v369
  %v408 = vmul.f32 %v369, %v407
  %v409 = vsub.f32 1.0, %v408
  %v410 = vmul.f32 %v407, %v409
  %v411 = vadd.f32 %v407, %v410
  %vm412 = vweird.f32 %v369
  %vm413 = vweird.f32 %v407
  %vm414 = vmor %vm412, %vm413
  %v415 = vsel %vm414, %v407, %v411
  %v416 = vand.u32 2147483647, %v369
  %vm417 = vcmp.eq.f32.partialorder %v416, 8.507059e+37
  %v418 = vand.u32 %v369, 2147483648
  %v419 = vor.u32 1.1754944e-38, %v418
  %v420 = vsel %vm417, %v419, %v415
  %v421 = vmul.f32 %v259, %v420
  %v422 = vrcp.pop %v370
  %v423 = vmul.f32 %v370, %v422
  %v424 = vsub.f32 1.0, %v423
  %v425 = vmul.f32 %v422, %v424
  %v426 = vadd.f32 %v422, %v425
  %vm427 = vweird.f32 %v370
  %vm428 = vweird.f32 %v422
  %vm429 = vmor %vm427, %vm428
  %v430 = vsel %vm429, %v422, %v426
  %v431 = vand.u32 2147483647, %v370
  %vm432 = vcmp.eq.f32.partialorder %v431, 8.507059e+37
  %v433 = vand.u32 %v370, 2147483648
  %v434 = vor.u32 1.1754944e-38, %v433
  %v435 = vsel %vm432, %v434, %v430
  %v436 = vmul.f32 %v260, %v435
  %v437 = vrcp.pop %v371
  %v438 = vmul.f32 %v371, %v437
  %v439 = vsub.f32 1.0, %v438
  %v440 = vmul.f32 %v437, %v439
  %v441 = vadd.f32 %v437, %v440
  %vm442 = vweird.f32 %v371
  %vm443 = vweird.f32 %v437
  %vm444 = vmor %vm442, %vm443
  %v445 = vsel %vm444, %v437, %v441
  %v446 = vand.u32 2147483647, %v371
  %vm447 = vcmp.eq.f32.partialorder %v446, 8.507059e+37
  %v448 = vand.u32 %v371, 2147483648
  %v449 = vor.u32 1.1754944e-38, %v448
  %v450 = vsel %vm447, %v449, %v445
  %v451 = vmul.f32 %v261, %v450
  %v452 = vrcp.pop %v372
  %v453 = vmul.f32 %v372, %v452
  %v454 = vsub.f32 1.0, %v453
  %v455 = vmul.f32 %v452, %v454
  %v456 = vadd.f32 %v452, %v455
  %vm457 = vweird.f32 %v372
  %vm458 = vweird.f32 %v452
  %vm459 = vmor %vm457, %vm458
  %v460 = vsel %vm459, %v452, %v456
  %v461 = vand.u32 2147483647, %v372
  %vm462 = vcmp.eq.f32.partialorder %v461, 8.507059e+37
  %v463 = vand.u32 %v372, 2147483648
  %v464 = vor.u32 1.1754944e-38, %v463
  %v465 = vsel %vm462, %v464, %v460
  %v466 = vmul.f32 %v262, %v465
  %v467 = vrcp.pop %v373
  %v468 = vmul.f32 %v373, %v467
  %v469 = vsub.f32 1.0, %v468
  %v470 = vmul.f32 %v467, %v469
  %v471 = vadd.f32 %v467, %v470
  %vm472 = vweird.f32 %v373
  %vm473 = vweird.f32 %v467
  %vm474 = vmor %vm472, %vm473
  %v475 = vsel %vm474, %v467, %v471
  %v476 = vand.u32 2147483647, %v373
  %vm477 = vcmp.eq.f32.partialorder %v476, 8.507059e+37
  %v478 = vand.u32 %v373, 2147483648
  %v479 = vor.u32 1.1754944e-38, %v478
  %v480 = vsel %vm477, %v479, %v475
  %v481 = vmul.f32 %v263, %v480
  %v482 = vrcp.pop %v374
  %v483 = vmul.f32 %v374, %v482
  %v484 = vsub.f32 1.0, %v483
  %v485 = vmul.f32 %v482, %v484
  %v486 = vadd.f32 %v482, %v485
  %vm487 = vweird.f32 %v374
  %vm488 = vweird.f32 %v482
  %vm489 = vmor %vm487, %vm488
  %v490 = vsel %vm489, %v482, %v486
  %v491 = vand.u32 2147483647, %v374
  %vm492 = vcmp.eq.f32.partialorder %v491, 8.507059e+37
  %v493 = vand.u32 %v374, 2147483648
  %v494 = vor.u32 1.1754944e-38, %v493
  %v495 = vsel %vm492, %v494, %v490
  %v496 = vmul.f32 %v264, %v495
  %v497 = vrcp.pop %v375
  %v498 = vmul.f32 %v375, %v497
  %v499 = vsub.f32 1.0, %v498
  %v500 = vmul.f32 %v497, %v499
  %v501 = vadd.f32 %v497, %v500
  %vm502 = vweird.f32 %v375
  %vm503 = vweird.f32 %v497
  %vm504 = vmor %vm502, %vm503
  %v505 = vsel %vm504, %v497, %v501
  %v506 = vand.u32 2147483647, %v375
  %vm507 = vcmp.eq.f32.partialorder %v506, 8.507059e+37
  %v508 = vand.u32 %v375, 2147483648
  %v509 = vor.u32 1.1754944e-38, %v508
  %v510 = vsel %vm507, %v509, %v505
  %v511 = vmul.f32 %v265, %v510
  %v512 = vrcp.pop %v376
  %v513 = vmul.f32 %v376, %v512
  %v514 = vsub.f32 1.0, %v513
  %v515 = vmul.f32 %v512, %v514
  %v516 = vadd.f32 %v512, %v515
  %vm517 = vweird.f32 %v376
  %vm518 = vweird.f32 %v512
  %vm519 = vmor %vm517, %vm518
  %v520 = vsel %vm519, %v512, %v516
  %v521 = vand.u32 2147483647, %v376
  %vm522 = vcmp.eq.f32.partialorder %v521, 8.507059e+37
  %v523 = vand.u32 %v376, 2147483648
  %v524 = vor.u32 1.1754944e-38, %v523
  %v525 = vsel %vm522, %v524, %v520
  %v526 = vmul.f32 %v266, %v525
  %v527 = vld [vmem:[%s2] sm:$0xff]
  %v528 = vld [vmem:[%s2 + $0x8] sm:$0xff]
  %v529 = vld [vmem:[%s2 + $0x10] sm:$0xf]
  %533 = vst [vmem:[#allocation1] ss:$4 sm:$0xff] %v527
  %s534 = scalar_lea.vmem [#allocation1], 32
  %535 = vst [vmem:[%s534] ss:$4 sm:$0xff] %v528
  %v536 = vld.sshfl [vmem:[#allocation1] sm:$0xff pattern:$0x73625140]
  %v537 = vld.sshfl [vmem:[#allocation1 + $0x8] sm:$0xff pattern:$0x73625140]
  %v538 = vld.sshfl [vmem:[#allocation1 + $0x10] sm:$0xff pattern:$0x73625140]
  %v539 = vld.sshfl [vmem:[#allocation1 + $0x18] sm:$0xff pattern:$0x73625140]
  %v540 = vld.sshfl [vmem:[#allocation1 + $0x20] sm:$0xff pattern:$0x73625140]
  %v541 = vld.sshfl [vmem:[#allocation1 + $0x28] sm:$0xff pattern:$0x73625140]
  %v542 = vld.sshfl [vmem:[#allocation1 + $0x30] sm:$0xff pattern:$0x73625140]
  %v543 = vld.sshfl [vmem:[#allocation1 + $0x38] sm:$0xff pattern:$0x73625140]
  %544 = vst [vmem:[#allocation1] ss:$4 sm:$0xff] %v529
  %v545 = vld.sshfl [vmem:[#allocation1] sm:$0xff pattern:$0x73625140]
  %v546 = vld.sshfl [vmem:[#allocation1 + $0x8] sm:$0xff pattern:$0x73625140]
  %v567 = vrot.slane %v391, 6
  %v568 = vrot.slane %v406, 6
  %v569 = vrot.slane %v421, 6
  %v570 = vrot.slane %v436, 6
  %v571 = vrot.slane %v451, 6
  %v572 = vrot.slane %v466, 6
  %v573 = vrot.slane %v481, 6
  %v574 = vrot.slane %v496, 6
  %v575 = vrot.slane %v511, 6
  %v576 = vrot.slane %v526, 6
  %vm587 = vcmask 1041408
  %v588 = vsel %vm587, %v536, %v567
  %v589 = vsel %vm587, %v537, %v568
  %v590 = vsel %vm587, %v538, %v569
  %v591 = vsel %vm587, %v539, %v570
  %v592 = vsel %vm587, %v540, %v571
  %v593 = vsel %vm587, %v541, %v572
  %v594 = vsel %vm587, %v542, %v573
  %v595 = vsel %vm587, %v543, %v574
  %v596 = vsel %vm587, %v545, %v575
  %v597 = vsel %vm587, %v546, %v576
  %v598 = vlaneseq
  %v599 = vand.u32 %v598, 127
  %v600 = vadd.s32 %v599, 128
  %v601 = vadd.s32 %v599, 256
  %v602 = vadd.s32 %v599, 384
  %v603 = vadd.s32 %v599, 512
  %v604 = vadd.s32 %v599, 640
  %v605 = vadd.s32 %v599, 768
  %v606 = vadd.s32 %v599, 896
  %v607 = vadd.s32 %v599, 1024
  %v608 = vadd.s32 %v599, 1152
  %vm609 = vcmask 1043456
  %v610 = vsel %vm609, %v588, -inf
  %v611 = vsel %vm609, %v589, -inf
  %v612 = vsel %vm609, %v590, -inf
  %v613 = vsel %vm609, %v591, -inf
  %v614 = vsel %vm609, %v592, -inf
  %v615 = vmax.f32 %v610, %v614
  %v616 = vsel %vm609, %v593, -inf
  %v617 = vmax.f32 %v611, %v616
  %v618 = vsel %vm609, %v594, -inf
  %v619 = vmax.f32 %v612, %v618
  %v620 = vsel %vm609, %v595, -inf
  %v621 = vmax.f32 %v613, %v620
  %v622 = vsel %vm609, %v596, -inf
  %v623 = vmax.f32 %v615, %v622
  %v624 = vsel %vm609, %v597, -inf
  %v625 = vmax.f32 %v617, %v624
  %v626 = vmax.f32 %v623, %v625
  %v627 = vmax.f32 %v619, %v621
  %v628 = vmax.f32 %v626, %v627
  %629 = vmax.xlane.f32.xlu0 %v628
  %v630 = vpop.xlane.xlu0 %629
  %vm631 = vcmp.eq.f32.partialorder %v588, %v630
  %vm632 = vcmp.eq.f32.partialorder %v589, %v630
  %vm633 = vcmp.eq.f32.partialorder %v590, %v630
  %vm634 = vcmp.eq.f32.partialorder %v591, %v630
  %vm635 = vcmp.eq.f32.partialorder %v592, %v630
  %vm636 = vcmp.eq.f32.partialorder %v593, %v630
  %vm637 = vcmp.eq.f32.partialorder %v594, %v630
  %vm638 = vcmp.eq.f32.partialorder %v595, %v630
  %vm639 = vcmp.eq.f32.partialorder %v596, %v630
  %vm640 = vcmp.eq.f32.partialorder %v597, %v630
  %v641 = vsel %vm631, %v599, 1280
  %v642 = vsel %vm632, %v600, 1280
  %v643 = vsel %vm633, %v601, 1280
  %v644 = vsel %vm634, %v602, 1280
  %v645 = vsel %vm635, %v603, 1280
  %v646 = vsel %vm636, %v604, 1280
  %v647 = vsel %vm637, %v605, 1280
  %v648 = vsel %vm638, %v606, 1280
  %v649 = vsel %vm639, %v607, 1280
  %v650 = vsel %vm640, %v608, 1280
  %v651 = vsel %vm609, %v641, 2147483647
  %v652 = vsel %vm609, %v642, 2147483647
  %v653 = vsel %vm609, %v643, 2147483647
  %v654 = vsel %vm609, %v644, 2147483647
  %v655 = vsel %vm609, %v645, 2147483647
  %vm656 = vcmp.lt.s32.totalorder %v651, %v655
  %v657 = vsel %vm656, %v651, %v655
  %v658 = vsel %vm609, %v646, 2147483647
  %vm659 = vcmp.lt.s32.totalorder %v652, %v658
  %v660 = vsel %vm659, %v652, %v658
  %v661 = vsel %vm609, %v647, 2147483647
  %vm662 = vcmp.lt.s32.totalorder %v653, %v661
  %v663 = vsel %vm662, %v653, %v661
  %v664 = vsel %vm609, %v648, 2147483647
  %vm665 = vcmp.lt.s32.totalorder %v654, %v664
  %v666 = vsel %vm665, %v654, %v664
  %v667 = vsel %vm609, %v649, 2147483647
  %vm668 = vcmp.lt.s32.totalorder %v657, %v667
  %v669 = vsel %vm668, %v657, %v667
  %v670 = vsel %vm609, %v650, 2147483647
  %vm671 = vcmp.lt.s32.totalorder %v660, %v670
  %v672 = vsel %vm671, %v660, %v670
  %vm673 = vcmp.lt.s32.totalorder %v669, %v672
  %v674 = vsel %vm673, %v669, %v672
  %vm675 = vcmp.lt.s32.totalorder %v663, %v666
  %v676 = vsel %vm675, %v663, %v666
  %vm677 = vcmp.lt.s32.totalorder %v674, %v676
  %v678 = vsel %vm677, %v674, %v676
  %v679 = vand.u32 %v678, 65535
  %v680 = vshra.s32 %v678, 16
  %v681 = vcvt.s32.f32 %v679
  %v682 = vcvt.s32.f32 %v680
  %683 = vmin.xlane.f32.xlu0 %v682
  %v684 = vpop.xlane.xlu0 %683
  %vm685 = vcmp.eq.f32.partialorder %v682, %v684
  %v686 = vsel %vm685, %v681, inf
  %687 = vmin.xlane.f32.xlu0 %v686
  %v688 = vpop.xlane.xlu0 %687
  %v689 = vcvt.f32.s32 %v688
  %v690 = vcvt.f32.s32 %v684
  %v691 = vshll.u32 %v690, 16
  %v692 = vadd.s32 %v691, %v689
  %v693 = vxor.u32 %v630, 2147483648
  %v694 = vmul.f32 %v693, 1.442695
  %v695 = vpow.pop %v694
  %v696 = vadd.f32 %v695, 1.0
  %v697 = vrcp.pop %v696
  %v698 = vmul.f32 %v696, %v697
  %v699 = vsub.f32 1.0, %v698
  %v700 = vmul.f32 %v697, %v699
  %v701 = vadd.f32 %v697, %v700
  %vm702 = vweird.f32 %v696
  %vm703 = vweird.f32 %v697
  %vm704 = vmor %vm702, %vm703
  %v705 = vsel %vm704, %v697, %v701
  %v706 = vand.u32 2147483647, %v696
  %vm707 = vcmp.eq.f32.partialorder %v706, 8.507059e+37
  %v708 = vand.u32 %v696, 2147483648
  %v709 = vor.u32 1.1754944e-38, %v708
  %v710 = vsel %vm707, %v709, %v705
  %v711 = vmul.f32 1.0, %v710
  %vm712 = vcmp.eq.s32.totalorder %v599, %v692
  %vm713 = vcmp.eq.s32.totalorder %v600, %v692
  %vm714 = vcmp.eq.s32.totalorder %v601, %v692
  %vm715 = vcmp.eq.s32.totalorder %v602, %v692
  %vm716 = vcmp.eq.s32.totalorder %v603, %v692
  %vm717 = vcmp.eq.s32.totalorder %v604, %v692
  %vm718 = vcmp.eq.s32.totalorder %v605, %v692
  %vm719 = vcmp.eq.s32.totalorder %v606, %v692
  %vm720 = vcmp.eq.s32.totalorder %v607, %v692
  %vm721 = vcmp.eq.s32.totalorder %v608, %v692
  %v722 = vsel %vm712, 1, 0
  %v723 = vsel %vm713, 1, 0
  %v724 = vsel %vm714, 1, 0
  %v725 = vsel %vm715, 1, 0
  %v726 = vsel %vm716, 1, 0
  %v727 = vsel %vm717, 1, 0
  %v728 = vsel %vm718, 1, 0
  %v729 = vsel %vm719, 1, 0
  %v730 = vsel %vm720, 1, 0
  %v731 = vsel %vm721, 1, 0
  %v732 = vcvt.s32.f32 %v722
  %v733 = vcvt.s32.f32 %v723
  %v734 = vcvt.s32.f32 %v724
  %v735 = vcvt.s32.f32 %v725
  %v736 = vcvt.s32.f32 %v726
  %v737 = vcvt.s32.f32 %v727
  %v738 = vcvt.s32.f32 %v728
  %v739 = vcvt.s32.f32 %v729
  %v740 = vcvt.s32.f32 %v730
  %v741 = vcvt.s32.f32 %v731
  %742 = vst [vmem:[#allocation1] ss:$2 sm:$0xff] %v20
  %s743 = scalar_lea.vmem [#allocation1], 16
  %744 = vst [vmem:[%s743] ss:$2 sm:$0xff] %v21
  %s745 = scalar_lea.vmem [#allocation1], 32
  %746 = vst [vmem:[%s745] ss:$2 sm:$0xff] %v22
  %s747 = scalar_lea.vmem [#allocation1], 48
  %748 = vst [vmem:[%s747] ss:$2 sm:$0xff] %v23
  %v749 = vld.sshfl [vmem:[#allocation1] sm:$0xff pattern:$0x75316420]
  %v750 = vld.sshfl [vmem:[#allocation1 + $0x8] sm:$0xff pattern:$0x75316420]
  %v751 = vld.sshfl [vmem:[#allocation1 + $0x10] sm:$0xff pattern:$0x75316420]
  %v752 = vld.sshfl [vmem:[#allocation1 + $0x18] sm:$0xff pattern:$0x75316420]
  %v753 = vld.sshfl [vmem:[#allocation1 + $0x20] sm:$0xff pattern:$0x75316420]
  %v754 = vld.sshfl [vmem:[#allocation1 + $0x28] sm:$0xff pattern:$0x75316420]
  %v755 = vld.sshfl [vmem:[#allocation1 + $0x30] sm:$0xff pattern:$0x75316420]
  %v756 = vld.sshfl [vmem:[#allocation1 + $0x38] sm:$0xff pattern:$0x75316420]
  %757 = vst [vmem:[#allocation1] ss:$2 sm:$0xff] %v24
  %v758 = vld.sshfl [vmem:[#allocation1] sm:$0xff pattern:$0x75316420]
  %v759 = vld.sshfl [vmem:[#allocation1 + $0x8] sm:$0xff pattern:$0x75316420]
  %770 = vmatpush.xpose.msra.mxu0 0.0
  %771 = vmatpush.xpose.msra.mxu0 0.0
  %772 = vmatpush.xpose.msra.mxu0 0.0
  %773 = vmatpush.xpose.msra.mxu0 0.0
  %774 = vmatpush.xpose.msra.mxu0 0.0
  %775 = vmatpush.xpose.msra.mxu0 0.0
  %776 = vmatpush.xpose.msra.mxu0 0.0
  %777 = vmatpush.xpose.msra.mxu0 0.0
  %778 = vmatpush.xpose.msra.mxu0 0.0
  %779 = vmatpush.xpose.msra.mxu0 0.0
  %780 = vmatpush.xpose.msra.mxu0 0.0
  %781 = vmatpush.xpose.msra.mxu0 0.0
  %782 = vmatpush.xpose.msra.mxu0 0.0
  %783 = vmatpush.xpose.msra.mxu0 0.0
  %784 = vmatpush.xpose.msra.mxu0 0.0
  %785 = vmatpush.xpose.msra.mxu0 %v749
  %786 = vmatmul.f32.gmra.mxu0 %v732
  %v787 = vpop.f32.mrf.mxu0
  %v788 = vadd.f32 0.0, %v787
  %789 = vdwg.mxu0
  %790 = vmatpush.xpose.msra.mxu0 0.0
  %791 = vmatpush.xpose.msra.mxu0 0.0
  %792 = vmatpush.xpose.msra.mxu0 0.0
  %793 = vmatpush.xpose.msra.mxu0 0.0
  %794 = vmatpush.xpose.msra.mxu0 0.0
  %795 = vmatpush.xpose.msra.mxu0 0.0
  %796 = vmatpush.xpose.msra.mxu0 0.0
  %797 = vmatpush.xpose.msra.mxu0 0.0
  %798 = vmatpush.xpose.msra.mxu0 0.0
  %799 = vmatpush.xpose.msra.mxu0 0.0
  %800 = vmatpush.xpose.msra.mxu0 0.0
  %801 = vmatpush.xpose.msra.mxu0 0.0
  %802 = vmatpush.xpose.msra.mxu0 0.0
  %803 = vmatpush.xpose.msra.mxu0 0.0
  %804 = vmatpush.xpose.msra.mxu0 0.0
  %805 = vmatpush.xpose.msra.mxu0 %v750
  %806 = vmatmul.f32.gmra.mxu0 %v733
  %v807 = vpop.f32.mrf.mxu0
  %v808 = vadd.f32 %v788, %v807
  %809 = vdwg.mxu0
  %810 = vmatpush.xpose.msra.mxu0 0.0
  %811 = vmatpush.xpose.msra.mxu0 0.0
  %812 = vmatpush.xpose.msra.mxu0 0.0
  %813 = vmatpush.xpose.msra.mxu0 0.0
  %814 = vmatpush.xpose.msra.mxu0 0.0
  %815 = vmatpush.xpose.msra.mxu0 0.0
  %816 = vmatpush.xpose.msra.mxu0 0.0
  %817 = vmatpush.xpose.msra.mxu0 0.0
  %818 = vmatpush.xpose.msra.mxu0 0.0
  %819 = vmatpush.xpose.msra.mxu0 0.0
  %820 = vmatpush.xpose.msra.mxu0 0.0
  %821 = vmatpush.xpose.msra.mxu0 0.0
  %822 = vmatpush.xpose.msra.mxu0 0.0
  %823 = vmatpush.xpose.msra.mxu0 0.0
  %824 = vmatpush.xpose.msra.mxu0 0.0
  %825 = vmatpush.xpose.msra.mxu0 %v751
  %826 = vmatmul.f32.gmra.mxu0 %v734
  %v827 = vpop.f32.mrf.mxu0
  %v828 = vadd.f32 %v808, %v827
  %829 = vdwg.mxu0
  %830 = vmatpush.xpose.msra.mxu0 0.0
  %831 = vmatpush.xpose.msra.mxu0 0.0
  %832 = vmatpush.xpose.msra.mxu0 0.0
  %833 = vmatpush.xpose.msra.mxu0 0.0
  %834 = vmatpush.xpose.msra.mxu0 0.0
  %835 = vmatpush.xpose.msra.mxu0 0.0
  %836 = vmatpush.xpose.msra.mxu0 0.0
  %837 = vmatpush.xpose.msra.mxu0 0.0
  %838 = vmatpush.xpose.msra.mxu0 0.0
  %839 = vmatpush.xpose.msra.mxu0 0.0
  %840 = vmatpush.xpose.msra.mxu0 0.0
  %841 = vmatpush.xpose.msra.mxu0 0.0
  %842 = vmatpush.xpose.msra.mxu0 0.0
  %843 = vmatpush.xpose.msra.mxu0 0.0
  %844 = vmatpush.xpose.msra.mxu0 0.0
  %845 = vmatpush.xpose.msra.mxu0 %v752
  %846 = vmatmul.f32.gmra.mxu0 %v735
  %v847 = vpop.f32.mrf.mxu0
  %v848 = vadd.f32 %v828, %v847
  %849 = vdwg.mxu0
  %850 = vmatpush.xpose.msra.mxu0 0.0
  %851 = vmatpush.xpose.msra.mxu0 0.0
  %852 = vmatpush.xpose.msra.mxu0 0.0
  %853 = vmatpush.xpose.msra.mxu0 0.0
  %854 = vmatpush.xpose.msra.mxu0 0.0
  %855 = vmatpush.xpose.msra.mxu0 0.0
  %856 = vmatpush.xpose.msra.mxu0 0.0
  %857 = vmatpush.xpose.msra.mxu0 0.0
  %858 = vmatpush.xpose.msra.mxu0 0.0
  %859 = vmatpush.xpose.msra.mxu0 0.0
  %860 = vmatpush.xpose.msra.mxu0 0.0
  %861 = vmatpush.xpose.msra.mxu0 0.0
  %862 = vmatpush.xpose.msra.mxu0 0.0
  %863 = vmatpush.xpose.msra.mxu0 0.0
  %864 = vmatpush.xpose.msra.mxu0 0.0
  %865 = vmatpush.xpose.msra.mxu0 %v753
  %866 = vmatmul.f32.gmra.mxu0 %v736
  %v867 = vpop.f32.mrf.mxu0
  %v868 = vadd.f32 %v848, %v867
  %869 = vdwg.mxu0
  %870 = vmatpush.xpose.msra.mxu0 0.0
  %871 = vmatpush.xpose.msra.mxu0 0.0
  %872 = vmatpush.xpose.msra.mxu0 0.0
  %873 = vmatpush.xpose.msra.mxu0 0.0
  %874 = vmatpush.xpose.msra.mxu0 0.0
  %875 = vmatpush.xpose.msra.mxu0 0.0
  %876 = vmatpush.xpose.msra.mxu0 0.0
  %877 = vmatpush.xpose.msra.mxu0 0.0
  %878 = vmatpush.xpose.msra.mxu0 0.0
  %879 = vmatpush.xpose.msra.mxu0 0.0
  %880 = vmatpush.xpose.msra.mxu0 0.0
  %881 = vmatpush.xpose.msra.mxu0 0.0
  %882 = vmatpush.xpose.msra.mxu0 0.0
  %883 = vmatpush.xpose.msra.mxu0 0.0
  %884 = vmatpush.xpose.msra.mxu0 0.0
  %885 = vmatpush.xpose.msra.mxu0 %v754
  %886 = vmatmul.f32.gmra.mxu0 %v737
  %v887 = vpop.f32.mrf.mxu0
  %v888 = vadd.f32 %v868, %v887
  %889 = vdwg.mxu0
  %890 = vmatpush.xpose.msra.mxu0 0.0
  %891 = vmatpush.xpose.msra.mxu0 0.0
  %892 = vmatpush.xpose.msra.mxu0 0.0
  %893 = vmatpush.xpose.msra.mxu0 0.0
  %894 = vmatpush.xpose.msra.mxu0 0.0
  %895 = vmatpush.xpose.msra.mxu0 0.0
  %896 = vmatpush.xpose.msra.mxu0 0.0
  %897 = vmatpush.xpose.msra.mxu0 0.0
  %898 = vmatpush.xpose.msra.mxu0 0.0
  %899 = vmatpush.xpose.msra.mxu0 0.0
  %900 = vmatpush.xpose.msra.mxu0 0.0
  %901 = vmatpush.xpose.msra.mxu0 0.0
  %902 = vmatpush.xpose.msra.mxu0 0.0
  %903 = vmatpush.xpose.msra.mxu0 0.0
  %904 = vmatpush.xpose.msra.mxu0 0.0
  %905 = vmatpush.xpose.msra.mxu0 %v755
  %906 = vmatmul.f32.gmra.mxu0 %v738
  %v907 = vpop.f32.mrf.mxu0
  %v908 = vadd.f32 %v888, %v907
  %909 = vdwg.mxu0
  %910 = vmatpush.xpose.msra.mxu0 0.0
  %911 = vmatpush.xpose.msra.mxu0 0.0
  %912 = vmatpush.xpose.msra.mxu0 0.0
  %913 = vmatpush.xpose.msra.mxu0 0.0
  %914 = vmatpush.xpose.msra.mxu0 0.0
  %915 = vmatpush.xpose.msra.mxu0 0.0
  %916 = vmatpush.xpose.msra.mxu0 0.0
  %917 = vmatpush.xpose.msra.mxu0 0.0
  %918 = vmatpush.xpose.msra.mxu0 0.0
  %919 = vmatpush.xpose.msra.mxu0 0.0
  %920 = vmatpush.xpose.msra.mxu0 0.0
  %921 = vmatpush.xpose.msra.mxu0 0.0
  %922 = vmatpush.xpose.msra.mxu0 0.0
  %923 = vmatpush.xpose.msra.mxu0 0.0
  %924 = vmatpush.xpose.msra.mxu0 0.0
  %925 = vmatpush.xpose.msra.mxu0 %v756
  %926 = vmatmul.f32.gmra.mxu0 %v739
  %v927 = vpop.f32.mrf.mxu0
  %v928 = vadd.f32 %v908, %v927
  %929 = vdwg.mxu0
  %930 = vmatpush.xpose.msra.mxu0 0.0
  %931 = vmatpush.xpose.msra.mxu0 0.0
  %932 = vmatpush.xpose.msra.mxu0 0.0
  %933 = vmatpush.xpose.msra.mxu0 0.0
  %934 = vmatpush.xpose.msra.mxu0 0.0
  %935 = vmatpush.xpose.msra.mxu0 0.0
  %936 = vmatpush.xpose.msra.mxu0 0.0
  %937 = vmatpush.xpose.msra.mxu0 0.0
  %938 = vmatpush.xpose.msra.mxu0 0.0
  %939 = vmatpush.xpose.msra.mxu0 0.0
  %940 = vmatpush.xpose.msra.mxu0 0.0
  %941 = vmatpush.xpose.msra.mxu0 0.0
  %942 = vmatpush.xpose.msra.mxu0 0.0
  %943 = vmatpush.xpose.msra.mxu0 0.0
  %944 = vmatpush.xpose.msra.mxu0 0.0
  %945 = vmatpush.xpose.msra.mxu0 %v758
  %946 = vmatmul.f32.gmra.mxu0 %v740
  %v947 = vpop.f32.mrf.mxu0
  %v948 = vadd.f32 %v928, %v947
  %949 = vdwg.mxu0
  %950 = vmatpush.xpose.msra.mxu0 0.0
  %951 = vmatpush.xpose.msra.mxu0 0.0
  %952 = vmatpush.xpose.msra.mxu0 0.0
  %953 = vmatpush.xpose.msra.mxu0 0.0
  %954 = vmatpush.xpose.msra.mxu0 0.0
  %955 = vmatpush.xpose.msra.mxu0 0.0
  %956 = vmatpush.xpose.msra.mxu0 0.0
  %957 = vmatpush.xpose.msra.mxu0 0.0
  %958 = vmatpush.xpose.msra.mxu0 0.0
  %959 = vmatpush.xpose.msra.mxu0 0.0
  %960 = vmatpush.xpose.msra.mxu0 0.0
  %961 = vmatpush.xpose.msra.mxu0 0.0
  %962 = vmatpush.xpose.msra.mxu0 0.0
  %963 = vmatpush.xpose.msra.mxu0 0.0
  %964 = vmatpush.xpose.msra.mxu0 0.0
  %965 = vmatpush.xpose.msra.mxu0 %v759
  %966 = vmatmul.f32.gmra.mxu0 %v741
  %v967 = vpop.f32.mrf.mxu0
  %v968 = vadd.f32 %v948, %v967
  %969 = vdwg.mxu0
  %v970 = vld [vmem:[%s3] sm:$0xff]
  %v971 = vld [vmem:[%s3 + $0x8] sm:$0xff]
  %v972 = vld [vmem:[%s3 + $0x10] sm:$0xff]
  %v973 = vld [vmem:[%s3 + $0x18] sm:$0xff]
  %v974 = vld [vmem:[%s3 + $0x20] sm:$0xff]
  %v975 = vld [vmem:[%s3 + $0x28] sm:$0xff]
  %v976 = vld [vmem:[%s3 + $0x30] sm:$0xff]
  %v977 = vld [vmem:[%s3 + $0x38] sm:$0xff]
  %v978 = vld [vmem:[%s3 + $0x40] sm:$0xff]
  %v979 = vld [vmem:[%s3 + $0x48] sm:$0xff]
  %980 = vmatpush.xpose.msra.mxu0 0.0
  %981 = vmatpush.xpose.msra.mxu0 0.0
  %982 = vmatpush.xpose.msra.mxu0 0.0
  %983 = vmatpush.xpose.msra.mxu0 0.0
  %984 = vmatpush.xpose.msra.mxu0 0.0
  %985 = vmatpush.xpose.msra.mxu0 0.0
  %986 = vmatpush.xpose.msra.mxu0 0.0
  %987 = vmatpush.xpose.msra.mxu0 0.0
  %988 = vmatpush.xpose.msra.mxu0 0.0
  %989 = vmatpush.xpose.msra.mxu0 0.0
  %990 = vmatpush.xpose.msra.mxu0 0.0
  %991 = vmatpush.xpose.msra.mxu0 0.0
  %992 = vmatpush.xpose.msra.mxu0 0.0
  %993 = vmatpush.xpose.msra.mxu0 0.0
  %994 = vmatpush.xpose.msra.mxu0 0.0
  %995 = vmatpush.xpose.msra.mxu0 %v970
  %996 = vmatmul.f32.gmra.mxu0 %v732
  %v997 = vpop.f32.mrf.mxu0
  %v998 = vadd.f32 0.0, %v997
  %999 = vdwg.mxu0
  %1000 = vmatpush.xpose.msra.mxu0 0.0
  %1001 = vmatpush.xpose.msra.mxu0 0.0
  %1002 = vmatpush.xpose.msra.mxu0 0.0
  %1003 = vmatpush.xpose.msra.mxu0 0.0
  %1004 = vmatpush.xpose.msra.mxu0 0.0
  %1005 = vmatpush.xpose.msra.mxu0 0.0
  %1006 = vmatpush.xpose.msra.mxu0 0.0
  %1007 = vmatpush.xpose.msra.mxu0 0.0
  %1008 = vmatpush.xpose.msra.mxu0 0.0
  %1009 = vmatpush.xpose.msra.mxu0 0.0
  %1010 = vmatpush.xpose.msra.mxu0 0.0
  %1011 = vmatpush.xpose.msra.mxu0 0.0
  %1012 = vmatpush.xpose.msra.mxu0 0.0
  %1013 = vmatpush.xpose.msra.mxu0 0.0
  %1014 = vmatpush.xpose.msra.mxu0 0.0
  %1015 = vmatpush.xpose.msra.mxu0 %v971
  %1016 = vmatmul.f32.gmra.mxu0 %v733
  %v1017 = vpop.f32.mrf.mxu0
  %v1018 = vadd.f32 %v998, %v1017
  %1019 = vdwg.mxu0
  %1020 = vmatpush.xpose.msra.mxu0 0.0
  %1021 = vmatpush.xpose.msra.mxu0 0.0
  %1022 = vmatpush.xpose.msra.mxu0 0.0
  %1023 = vmatpush.xpose.msra.mxu0 0.0
  %1024 = vmatpush.xpose.msra.mxu0 0.0
  %1025 = vmatpush.xpose.msra.mxu0 0.0
  %1026 = vmatpush.xpose.msra.mxu0 0.0
  %1027 = vmatpush.xpose.msra.mxu0 0.0
  %1028 = vmatpush.xpose.msra.mxu0 0.0
  %1029 = vmatpush.xpose.msra.mxu0 0.0
  %1030 = vmatpush.xpose.msra.mxu0 0.0
  %1031 = vmatpush.xpose.msra.mxu0 0.0
  %1032 = vmatpush.xpose.msra.mxu0 0.0
  %1033 = vmatpush.xpose.msra.mxu0 0.0
  %1034 = vmatpush.xpose.msra.mxu0 0.0
  %1035 = vmatpush.xpose.msra.mxu0 %v972
  %1036 = vmatmul.f32.gmra.mxu0 %v734
  %v1037 = vpop.f32.mrf.mxu0
  %v1038 = vadd.f32 %v1018, %v1037
  %1039 = vdwg.mxu0
  %1040 = vmatpush.xpose.msra.mxu0 0.0
  %1041 = vmatpush.xpose.msra.mxu0 0.0
  %1042 = vmatpush.xpose.msra.mxu0 0.0
  %1043 = vmatpush.xpose.msra.mxu0 0.0
  %1044 = vmatpush.xpose.msra.mxu0 0.0
  %1045 = vmatpush.xpose.msra.mxu0 0.0
  %1046 = vmatpush.xpose.msra.mxu0 0.0
  %1047 = vmatpush.xpose.msra.mxu0 0.0
  %1048 = vmatpush.xpose.msra.mxu0 0.0
  %1049 = vmatpush.xpose.msra.mxu0 0.0
  %1050 = vmatpush.xpose.msra.mxu0 0.0
  %1051 = vmatpush.xpose.msra.mxu0 0.0
  %1052 = vmatpush.xpose.msra.mxu0 0.0
  %1053 = vmatpush.xpose.msra.mxu0 0.0
  %1054 = vmatpush.xpose.msra.mxu0 0.0
  %1055 = vmatpush.xpose.msra.mxu0 %v973
  %1056 = vmatmul.f32.gmra.mxu0 %v735
  %v1057 = vpop.f32.mrf.mxu0
  %v1058 = vadd.f32 %v1038, %v1057
  %1059 = vdwg.mxu0
  %1060 = vmatpush.xpose.msra.mxu0 0.0
  %1061 = vmatpush.xpose.msra.mxu0 0.0
  %1062 = vmatpush.xpose.msra.mxu0 0.0
  %1063 = vmatpush.xpose.msra.mxu0 0.0
  %1064 = vmatpush.xpose.msra.mxu0 0.0
  %1065 = vmatpush.xpose.msra.mxu0 0.0
  %1066 = vmatpush.xpose.msra.mxu0 0.0
  %1067 = vmatpush.xpose.msra.mxu0 0.0
  %1068 = vmatpush.xpose.msra.mxu0 0.0
  %1069 = vmatpush.xpose.msra.mxu0 0.0
  %1070 = vmatpush.xpose.msra.mxu0 0.0
  %1071 = vmatpush.xpose.msra.mxu0 0.0
  %1072 = vmatpush.xpose.msra.mxu0 0.0
  %1073 = vmatpush.xpose.msra.mxu0 0.0
  %1074 = vmatpush.xpose.msra.mxu0 0.0
  %1075 = vmatpush.xpose.msra.mxu0 %v974
  %1076 = vmatmul.f32.gmra.mxu0 %v736
  %v1077 = vpop.f32.mrf.mxu0
  %v1078 = vadd.f32 %v1058, %v1077
  %1079 = vdwg.mxu0
  %1080 = vmatpush.xpose.msra.mxu0 0.0
  %1081 = vmatpush.xpose.msra.mxu0 0.0
  %1082 = vmatpush.xpose.msra.mxu0 0.0
  %1083 = vmatpush.xpose.msra.mxu0 0.0
  %1084 = vmatpush.xpose.msra.mxu0 0.0
  %1085 = vmatpush.xpose.msra.mxu0 0.0
  %1086 = vmatpush.xpose.msra.mxu0 0.0
  %1087 = vmatpush.xpose.msra.mxu0 0.0
  %1088 = vmatpush.xpose.msra.mxu0 0.0
  %1089 = vmatpush.xpose.msra.mxu0 0.0
  %1090 = vmatpush.xpose.msra.mxu0 0.0
  %1091 = vmatpush.xpose.msra.mxu0 0.0
  %1092 = vmatpush.xpose.msra.mxu0 0.0
  %1093 = vmatpush.xpose.msra.mxu0 0.0
  %1094 = vmatpush.xpose.msra.mxu0 0.0
  %1095 = vmatpush.xpose.msra.mxu0 %v975
  %1096 = vmatmul.f32.gmra.mxu0 %v737
  %v1097 = vpop.f32.mrf.mxu0
  %v1098 = vadd.f32 %v1078, %v1097
  %1099 = vdwg.mxu0
  %1100 = vmatpush.xpose.msra.mxu0 0.0
  %1101 = vmatpush.xpose.msra.mxu0 0.0
  %1102 = vmatpush.xpose.msra.mxu0 0.0
  %1103 = vmatpush.xpose.msra.mxu0 0.0
  %1104 = vmatpush.xpose.msra.mxu0 0.0
  %1105 = vmatpush.xpose.msra.mxu0 0.0
  %1106 = vmatpush.xpose.msra.mxu0 0.0
  %1107 = vmatpush.xpose.msra.mxu0 0.0
  %1108 = vmatpush.xpose.msra.mxu0 0.0
  %1109 = vmatpush.xpose.msra.mxu0 0.0
  %1110 = vmatpush.xpose.msra.mxu0 0.0
  %1111 = vmatpush.xpose.msra.mxu0 0.0
  %1112 = vmatpush.xpose.msra.mxu0 0.0
  %1113 = vmatpush.xpose.msra.mxu0 0.0
  %1114 = vmatpush.xpose.msra.mxu0 0.0
  %1115 = vmatpush.xpose.msra.mxu0 %v976
  %1116 = vmatmul.f32.gmra.mxu0 %v738
  %v1117 = vpop.f32.mrf.mxu0
  %v1118 = vadd.f32 %v1098, %v1117
  %1119 = vdwg.mxu0
  %1120 = vmatpush.xpose.msra.mxu0 0.0
  %1121 = vmatpush.xpose.msra.mxu0 0.0
  %1122 = vmatpush.xpose.msra.mxu0 0.0
  %1123 = vmatpush.xpose.msra.mxu0 0.0
  %1124 = vmatpush.xpose.msra.mxu0 0.0
  %1125 = vmatpush.xpose.msra.mxu0 0.0
  %1126 = vmatpush.xpose.msra.mxu0 0.0
  %1127 = vmatpush.xpose.msra.mxu0 0.0
  %1128 = vmatpush.xpose.msra.mxu0 0.0
  %1129 = vmatpush.xpose.msra.mxu0 0.0
  %1130 = vmatpush.xpose.msra.mxu0 0.0
  %1131 = vmatpush.xpose.msra.mxu0 0.0
  %1132 = vmatpush.xpose.msra.mxu0 0.0
  %1133 = vmatpush.xpose.msra.mxu0 0.0
  %1134 = vmatpush.xpose.msra.mxu0 0.0
  %1135 = vmatpush.xpose.msra.mxu0 %v977
  %1136 = vmatmul.f32.gmra.mxu0 %v739
  %v1137 = vpop.f32.mrf.mxu0
  %v1138 = vadd.f32 %v1118, %v1137
  %1139 = vdwg.mxu0
  %1140 = vmatpush.xpose.msra.mxu0 0.0
  %1141 = vmatpush.xpose.msra.mxu0 0.0
  %1142 = vmatpush.xpose.msra.mxu0 0.0
  %1143 = vmatpush.xpose.msra.mxu0 0.0
  %1144 = vmatpush.xpose.msra.mxu0 0.0
  %1145 = vmatpush.xpose.msra.mxu0 0.0
  %1146 = vmatpush.xpose.msra.mxu0 0.0
  %1147 = vmatpush.xpose.msra.mxu0 0.0
  %1148 = vmatpush.xpose.msra.mxu0 0.0
  %1149 = vmatpush.xpose.msra.mxu0 0.0
  %1150 = vmatpush.xpose.msra.mxu0 0.0
  %1151 = vmatpush.xpose.msra.mxu0 0.0
  %1152 = vmatpush.xpose.msra.mxu0 0.0
  %1153 = vmatpush.xpose.msra.mxu0 0.0
  %1154 = vmatpush.xpose.msra.mxu0 0.0
  %1155 = vmatpush.xpose.msra.mxu0 %v978
  %1156 = vmatmul.f32.gmra.mxu0 %v740
  %v1157 = vpop.f32.mrf.mxu0
  %v1158 = vadd.f32 %v1138, %v1157
  %1159 = vdwg.mxu0
  %1160 = vmatpush.xpose.msra.mxu0 0.0
  %1161 = vmatpush.xpose.msra.mxu0 0.0
  %1162 = vmatpush.xpose.msra.mxu0 0.0
  %1163 = vmatpush.xpose.msra.mxu0 0.0
  %1164 = vmatpush.xpose.msra.mxu0 0.0
  %1165 = vmatpush.xpose.msra.mxu0 0.0
  %1166 = vmatpush.xpose.msra.mxu0 0.0
  %1167 = vmatpush.xpose.msra.mxu0 0.0
  %1168 = vmatpush.xpose.msra.mxu0 0.0
  %1169 = vmatpush.xpose.msra.mxu0 0.0
  %1170 = vmatpush.xpose.msra.mxu0 0.0
  %1171 = vmatpush.xpose.msra.mxu0 0.0
  %1172 = vmatpush.xpose.msra.mxu0 0.0
  %1173 = vmatpush.xpose.msra.mxu0 0.0
  %1174 = vmatpush.xpose.msra.mxu0 0.0
  %1175 = vmatpush.xpose.msra.mxu0 %v979
  %1176 = vmatmul.f32.gmra.mxu0 %v741
  %v1177 = vpop.f32.mrf.mxu0
  %v1178 = vadd.f32 %v1158, %v1177
  %1179 = vdwg.mxu0
  %v1180 = vlaneseq
  %v1181 = vshrl.u32 %v1180, 7
  %vm1182 = vcmp.eq.s32.totalorder %v1181, %v599
  %v1183 = vadd.s32 %v599, 2
  %vm1184 = vcmp.eq.s32.totalorder %v1181, %v1183
  %vm1185 = vmor %vm1182, %vm1184
  %v1186 = vsel %vm1185, 1, 0
  %v1187 = vcvt.s32.f32 %v1186
  %v1188 = vmul.f32 %v1178, %v1187
  %vm1189 = vcmask 11264
  %v1190 = vsel %vm1189, %v1188, 0.0
  %1191 = vadd.xlane.f32.xlu0 %v1190
  %v1192 = vpop.xlane.xlu0 %1191
  %1194 = vrot.lane.b32.xlu0 %v1187, 2
  %v1195 = vpop.permute.xlu0 %1194
  %v1197 = vmul.f32 %v1178, %v1195
  %1199 = vrot.lane.b32.xlu0 %v1197, 126
  %v1200 = vpop.permute.xlu0 %1199
  %v1202 = vsel %vm1189, %v1200, 0.0
  %1203 = vadd.xlane.f32.xlu0 %v1202
  %v1204 = vpop.xlane.xlu0 %1203
  %1205 = vrot.lane.b32.xlu0 %v1187, 4
  %v1206 = vpop.permute.xlu0 %1205
  %v1208 = vmul.f32 %v1178, %v1206
  %1210 = vrot.lane.b32.xlu0 %v1208, 124
  %v1211 = vpop.permute.xlu0 %1210
  %v1213 = vsel %vm1189, %v1211, 0.0
  %1214 = vadd.xlane.f32.xlu0 %v1213
  %v1215 = vpop.xlane.xlu0 %1214
  %1216 = vrot.lane.b32.xlu0 %v1187, 6
  %v1217 = vpop.permute.xlu0 %1216
  %v1219 = vmul.f32 %v1178, %v1217
  %1221 = vrot.lane.b32.xlu0 %v1219, 122
  %v1222 = vpop.permute.xlu0 %1221
  %v1224 = vsel %vm1189, %v1222, 0.0
  %1225 = vadd.xlane.f32.xlu0 %v1224
  %v1226 = vpop.xlane.xlu0 %1225
  %1228 = vrot.lane.b32.xlu0 %v968, 2
  %v1229 = vpop.permute.xlu0 %1228
  %v1231 = vsub.f32 %v968, %v1229
  %v1232 = vmul.f32 %v1192, %v1231
  %1233 = vrot.lane.b32.xlu0 %v968, 126
  %v1234 = vpop.permute.xlu0 %1233
  %v1236 = vadd.f32 %v968, %v1234
  %v1237 = vmul.f32 %v1236, 0.5
  %1239 = vrot.lane.b32.xlu0 %v1237, 2
  %v1240 = vpop.permute.xlu0 %1239
  %v1242 = vadd.f32 %v1232, %v1240
  %v1243 = vmul.f32 %v1204, %v1231
  %v1244 = vadd.f32 %v1243, %v1240
  %v1245 = vmul.f32 %v1215, 1.442695
  %v1246 = vpow.pop %v1245
  %v1247 = vmul.f32 %v1246, %v1231
  %v1248 = vmul.f32 %v1226, 1.442695
  %v1249 = vpow.pop %v1248
  %v1250 = vmul.f32 %v1249, %v1231
  %v1251 = vmul.f32 %v1247, 0.5
  %v1252 = vsub.f32 %v1242, %v1251
  %v1253 = vmul.f32 %v1250, 0.5
  %v1254 = vsub.f32 %v1244, %v1253
  %v1255 = vadd.f32 %v1242, %v1251
  %v1256 = vadd.f32 %v1244, %v1253
  %v1257 = vrot.slane %v25, 6
  %v1259 = vsel %vm587, %v25, %v1257
  %v1260 = vrot.slane %v35, 6
  %v1262 = vsel %vm587, %v35, %v1260
  %v1263 = vmin.f32 %v1255, %v1259
  %1265 = vrot.lane.b32.xlu0 %v1259, 2
  %v1266 = vpop.permute.xlu0 %1265
  %v1268 = vmax.f32 %v1252, %v1266
  %v1269 = vsub.f32 %v1263, %v1268
  %v1270 = vmax.f32 %v1269, 0.0
  %v1271 = vmin.f32 %v1256, %v1259
  %v1272 = vmax.f32 %v1254, %v1266
  %v1273 = vsub.f32 %v1271, %v1272
  %v1274 = vmax.f32 %v1273, 0.0
  %1276 = vrot.lane.b32.xlu0 %v1274, 127
  %v1277 = vpop.permute.xlu0 %1276
  %v1279 = vmul.f32 %v1270, %v1277
  %1281 = vrot.lane.b32.xlu0 %v1250, 127
  %v1282 = vpop.permute.xlu0 %1281
  %v1284 = vmul.f32 %v1247, %v1282
  %v1285 = vadd.f32 %v1284, %v1262
  %v1286 = vsub.f32 %v1285, %v1279
  %v1287 = vadd.f32 %v1286, 1e-08
  %v1288 = vrcp.pop %v1287
  %v1289 = vmul.f32 %v1287, %v1288
  %v1290 = vsub.f32 1.0, %v1289
  %v1291 = vmul.f32 %v1288, %v1290
  %v1292 = vadd.f32 %v1288, %v1291
  %vm1293 = vweird.f32 %v1287
  %vm1294 = vweird.f32 %v1288
  %vm1295 = vmor %vm1293, %vm1294
  %v1296 = vsel %vm1295, %v1288, %v1292
  %v1297 = vand.u32 2147483647, %v1287
  %vm1298 = vcmp.eq.f32.partialorder %v1297, 8.507059e+37
  %v1299 = vand.u32 %v1287, 2147483648
  %v1300 = vor.u32 1.1754944e-38, %v1299
  %v1301 = vsel %vm1298, %v1300, %v1296
  %v1302 = vmul.f32 %v1279, %v1301
  %vm1303 = vcmp.ge.f32.partialorder %v1302, 0.5
  %v1304 = vsel %vm1303, 1, 0
  %v1305 = vcvt.s32.f32 %v1304
  %vm1306 = vcmask 17424
  %v1307 = vsel %vm1306, %v1305, 0.0
  %v1308 = vrot.slane %v1307, 4
  %v1309 = vadd.f32 %v1307, %v1308
  %v1310 = vrot.slane %v1309, 2
  %v1311 = vadd.f32 %v1309, %v1310
  %v1312 = vrot.slane %v1311, 1
  %v1313 = vadd.f32 %v1311, %v1312
  %v1314 = vmul.f32 %v1313, 0.5
  %v1316 = vrot.slane %v1305, 2
  %v1318 = vsel %vm1306, %v1316, 0.0
  %v1319 = vrot.slane %v1318, 4
  %v1320 = vadd.f32 %v1318, %v1319
  %v1321 = vrot.slane %v1320, 2
  %v1322 = vadd.f32 %v1320, %v1321
  %v1323 = vrot.slane %v1322, 1
  %v1324 = vadd.f32 %v1322, %v1323
  %v1325 = vmul.f32 %v1324, 0.5
  %v1326 = vld [vmem:[%s1] sm:$0x3]
  %v1327 = vadd.f32 %v1254, 1.0
  %v1328 = vmul.f32 %v1327, 0.5
  %1330 = vrot.lane.b32.xlu0 %v1326, 2
  %v1331 = vpop.permute.xlu0 %1330
  %v1333 = vmul.f32 %v1328, %v1331
  %v1334 = vadd.f32 %v1252, 1.0
  %v1335 = vmul.f32 %v1334, 0.5
  %v1336 = vmul.f32 %v1335, %v1331
  %v1337 = vadd.f32 %v1256, 1.0
  %v1338 = vmul.f32 %v1337, 0.5
  %v1339 = vmul.f32 %v1338, %v1331
  %v1340 = vadd.f32 %v1255, 1.0
  %v1341 = vmul.f32 %v1340, 0.5
  %v1342 = vmul.f32 %v1341, %v1331
  %1344 = vrot.lane.b32.xlu0 %v1333, 125
  %v1345 = vpop.permute.xlu0 %1344
  %1348 = vrot.lane.b32.xlu0 %v1336, 127
  %v1349 = vpop.permute.xlu0 %1348
  %1352 = vrot.lane.b32.xlu0 %v1339, 127
  %v1353 = vpop.permute.xlu0 %1352
  %1356 = vrot.lane.b32.xlu0 %v1342, 1
  %v1357 = vpop.permute.xlu0 %1356
  %1360 = vrot.lane.b32.xlu0 %v1314, 3
  %v1361 = vpop.permute.xlu0 %1360
  %1364 = vrot.lane.b32.xlu0 %v1325, 4
  %v1365 = vpop.permute.xlu0 %1364
  %vm1367 = vcmask 7168
  %v1368 = vsel %vm1367, %v1345, %v1349
  %vm1369 = vcmask 15360
  %v1370 = vsel %vm1369, %v1368, %v1353
  %vm1371 = vcmask 23552
  %v1372 = vsel %vm1371, %v1370, %v1357
  %vm1373 = vcmask 31744
  %v1374 = vsel %vm1373, %v1372, %v711
  %vm1375 = vcmask 39936
  %v1376 = vsel %vm1375, %v1374, %v1361
  %vm1377 = vcmask 48128
  %v1378 = vsel %vm1377, %v1376, %v1365
  %1379 = vst [vmem:[%s5] sm:$0xff] 0.0
  %vm1380 = vcmask 50176
  %1381 = vst.msk [vmem:[%s5] sm:$0x3] %vm1380, %v1378
  // Predicated region
  $region22: #{evaluator_forward.1} parent=0 // pred_check
    _
  $region23: #{evaluator_forward.1} parent=0 // pred_check_branch
    %1383 = sbr.rel (0) target = $region25
  $region24: #{evaluator_forward.1} parent=0 // pred_region
    _
  $region25: #{evaluator_forward.1} parent=0 // pred_fallthru
    _
  // Predicated region
  $region26: #{evaluator_forward.1} parent=0 // pred_check
    _
  $region27: #{evaluator_forward.1} parent=0 // pred_check_branch
    %1385 = sbr.rel (0) target = $region29
  $region28: #{evaluator_forward.1} parent=0 // pred_region
    _
  $region29: #{evaluator_forward.1} parent=0 // pred_fallthru
    _

</llo_original>
